<compile_context>
chip_gen: v5e
topology: v5e:2x2
jax: 0.10.0
libtpu: 0.0.40
codegen_flags: <defaults>
</compile_context>

<pallas_src>
import jax
import jax.numpy as jnp
from jax.experimental import pallas as pl
from jax.experimental.pallas import tpu as pltpu


# ---------------------------------------------------------------------------
# Pallas kernel: fused conv(im2col matmul) + folded-BN bias + ReLU + 2x2 pool
# ---------------------------------------------------------------------------
def _conv_bn_relu_pool_kernel(x_ref, w_ref, b_ref, o_ref):
    # x_ref : (4, TMG, G*K) bf16 -- 4 = 2x2 pool-window positions; G conv
    #                               output rows packed along the lane axis
    # w_ref : (G*K, G*C)    bf16 -- block-diagonal conv weight, BN scale folded
    # b_ref : (1, G*C)      f32  -- folded BN bias, tiled G times
    # o_ref : (TMG, G*C)         -- pooled activations, lane-dense (G*C = 128)
    four, tmg, gk = x_ref.shape
    # One dot for all four pool positions: weight pushed into the MXU once,
    # 4x longer LHS stream.  Leading-axis reshapes are free layout no-ops.
    x = x_ref[...].reshape(four * tmg, gk)
    acc = jnp.dot(x, w_ref[...], preferred_element_type=jnp.float32)
    acc = acc.reshape(four, tmg, acc.shape[-1])
    # 2x2 max-pool == elementwise max over the four pool positions; the pool
    # commutes with (+bias, ReLU) since both are monotone, so pool first.
    m = jnp.max(acc, axis=0)
    o_ref[...] = jnp.maximum(m + b_ref[...], 0.0).astype(o_ref.dtype)


def _round_up(x, m):
    return (x + m - 1) // m * m


def conv_bn_relu_pool(patches, w, bias, *, group, tm_pooled, out_dtype):
    """Fused conv (im2col matmul) + folded-BN bias + ReLU + 2x2 max-pool.

    patches : (4, Mp, K) bf16  -- Mp pooled output rows, 4 pool positions
    w       : (K, C)     bf16  -- BN-scale-folded conv weight
    bias    : (C,)       f32   -- BN-folded bias
    group   : G                -- pooled rows packed per stored lane row
                                  (G*C == 128 -> lane-dense output slab)
    returns : (Mp, C) out_dtype
    """
    four, mp, k = patches.shape
    assert four == 4
    kk, c = w.shape
    assert kk == k
    gk, gc = group * k, group * c

    # Grouped-row tiling: big tiles amortize the ~0.35us/step overhead, while
    # >=2 grid steps at small batch keep both v7x TensorCores busy.
    mg = pl.cdiv(mp, group)                 # grouped (lane-packed) rows
    tgt = max(8, tm_pooled // group)        # target grouped rows per tile
    nblk = pl.cdiv(mg, tgt)
    if nblk == 1 and mg >= 16:
        nblk = 2                            # v7x megacore: give core 1 work
    tmg = _round_up(pl.cdiv(mg, nblk), 8)   # 8-sublane aligned tile
    mg_pad = tmg * nblk
    mp_pad = mg_pad * group
    if mp_pad != mp:
        patches = jnp.pad(patches, ((0, 0), (0, mp_pad - mp), (0, 0)))
    # Free bitcast: pack G consecutive pooled rows into the lane axis.
    xg = patches.reshape(4, mg_pad, gk)

    # Block-diagonal weight -> the matmul emits the lane-packed layout
    # directly (stored last dim = G*C = 128: unmasked dense stores, dense HBM
    # slab).  Same HBM output bytes as (Mp, C); extra MXU columns are slack.
    wb = jnp.kron(jnp.eye(group, dtype=w.dtype), w)            # (G*K, G*C)
    bb = jnp.tile(bias.astype(jnp.float32), group).reshape(1, gc)

    out = pl.pallas_call(
        _conv_bn_relu_pool_kernel,
        out_shape=jax.ShapeDtypeStruct((mg_pad, gc), out_dtype),
        grid=(nblk,),
        in_specs=[
            pl.BlockSpec((4, tmg, gk), lambda i: (0, i, 0)),   # patch tile
            pl.BlockSpec((gk, gc), lambda i: (0, 0)),          # resident weight
            pl.BlockSpec((1, gc), lambda i: (0, 0)),           # resident bias
        ],
        out_specs=pl.BlockSpec((tmg, gc), lambda i: (i, 0)),
        compiler_params=pltpu.CompilerParams(
            dimension_semantics=("parallel",),                 # megacore shard
            vmem_limit_bytes=32 * 1024 * 1024),                # v5e headroom
    )(xg, wb, bb)

    out = out.reshape(mp_pad, c)            # free bitcast back to (rows, C)
    return out[:mp] if mp_pad != mp else out


# ---------------------------------------------------------------------------
# Host-side glue (layout plumbing only)
# ---------------------------------------------------------------------------
def im2col_pooled(x_nhwc, ksize):
    """NHWC -> (4, B*PH*PW, Cin*ksize*ksize) patches (input dtype preserved).

    The leading size-4 axis holds the four 2x2-maxpool window positions,
    built directly with strided slices (no stack over the full conv output and
    no 6-D interleaving transpose).  Column order (cin, kh, kw) matches
    torch's Conv2d weight flatten.
    """
    b, h, w, cin = x_nhwc.shape
    oh, ow = h - ksize + 1, w - ksize + 1
    assert oh % 2 == 0 and ow % 2 == 0
    ph, pw = oh // 2, ow // 2
    kk = cin * ksize * ksize
    pos = []
    for i in (0, 1):                        # pool-window row offset
        for j in (0, 1):                    # pool-window col offset
            cols = [x_nhwc[:, i + kh:i + kh + 2 * ph:2,
                           j + kw:j + kw + 2 * pw:2, :]
                    for kh in range(ksize) for kw in range(ksize)]
            p = jnp.stack(cols, axis=-1)    # (B, PH, PW, Cin, K*K)
            pos.append(p.reshape(b * ph * pw, kk))
    return jnp.stack(pos, axis=0)           # (4, B*PH*PW, Cin*K*K)


def _fold_bn(conv_bias, gamma, beta, mean, var, eps=1e-5):
    s = gamma / jnp.sqrt(var + eps)
    return s, (conv_bias - mean) * s + beta


@jax.jit
def cnn_forward(x, params):
    """x: (B, 1, 28, 28) NCHW float32 -> logits (B, 10) float32."""
    b = x.shape[0]
    x_nhwc = jnp.transpose(x, (0, 2, 3, 1)).astype(jnp.bfloat16)  # (B,28,28,1)

    # ---- conv1(1->16,5) + BN + Dropout + ReLU + MaxPool(2) ----
    # Dropout(0.2) is identity in eval/inference mode (no RNG mask needed).
    s1, b1 = _fold_bn(params["b1"], params["g1"], params["be1"],
                      params["m1"], params["v1"])
    w1 = (params["W1"].reshape(16, -1).T * s1[None, :]).astype(jnp.bfloat16)
    p1 = im2col_pooled(x_nhwc, 5)                          # (4, B*144, 25)
    # bf16 output: y1 only feeds the bf16 im2col of conv2 (halves HBM traffic).
    y1 = conv_bn_relu_pool(p1, w1, b1, group=8, tm_pooled=4096,
                           out_dtype=jnp.bfloat16)         # (B*144, 16) bf16
    x1_nhwc = y1.reshape(b, 12, 12, 16)

    # ---- conv2(16->32,5) + BN + ReLU + MaxPool(2) ----
    s2, b2 = _fold_bn(params["b2"], params["g2"], params["be2"],
                      params["m2"], params["v2"])
    w2 = (params["W2"].reshape(32, -1).T * s2[None, :]).astype(jnp.bfloat16)
    p2 = im2col_pooled(x1_nhwc, 5)                         # (4, B*16, 400)
    y2 = conv_bn_relu_pool(p2, w2, b2, group=4, tm_pooled=1024,
                           out_dtype=jnp.float32)          # (B*16, 32) f32

    # ---- flatten + Linear(512, 10) ----
    # Features are flattened in (h, w, c) order; permuting the Linear weight's
    # columns reproduces torch's NCHW .view() flatten exactly.
    feat = y2.reshape(b, 4 * 4 * 32)                       # (B, 512)
    wl_hwc = params["Wl"].reshape(10, 32, 4, 4).transpose(0, 2, 3, 1)
    wl_hwc = wl_hwc.reshape(10, 512)
    # Final Linear left to plain XLA per perf review (a dedicated pallas_call
    # for (B,512)@(512,10) is pure launch overhead).
    return feat @ wl_hwc.T + params["bl"]


# ---------------------------------------------------------------------------
# Pure-XLA f32 reference (torch eval-mode semantics) for a correctness check
# ---------------------------------------------------------------------------
def cnn_reference(x, params):
    def block(y, wk, bk, gk, bek, mk, vk):
        y = jax.lax.conv_general_dilated(
            y, params[wk], (1, 1), "VALID",
            dimension_numbers=("NCHW", "OIHW", "NCHW"))
        y = y + params[bk][None, :, None, None]
        s = params[gk] / jnp.sqrt(params[vk] + 1e-5)
        y = (y - params[mk][None, :, None, None]) * s[None, :, None, None] \
            + params[bek][None, :, None, None]
        y = jnp.maximum(y, 0.0)
        return jax.lax.reduce_window(y, -jnp.inf, jax.lax.max,
                                     (1, 1, 2, 2), (1, 1, 2, 2), "VALID")
    y = block(x, "W1", "b1", "g1", "be1", "m1", "v1")
    y = block(y, "W2", "b2", "g2", "be2", "m2", "v2")
    feat = y.reshape(y.shape[0], -1)
    return feat @ params["Wl"].T + params["bl"]


def init_params(key):
    ks = jax.random.split(key, 16)
    f32 = jnp.float32
    return {
        # conv1: Conv2d(1, 16, 5) + BatchNorm2d(16)
        "W1": 0.1 * jax.random.normal(ks[0], (16, 1, 5, 5), f32),
        "b1": 0.1 * jax.random.normal(ks[1], (16,), f32),
        "g1": 1.0 + 0.1 * jax.random.normal(ks[2], (16,), f32),
        "be1": 0.1 * jax.random.normal(ks[3], (16,), f32),
        "m1": 0.1 * jax.random.normal(ks[4], (16,), f32),
        "v1": jax.random.uniform(ks[5], (16,), f32, 0.5, 1.5),
        # conv2: Conv2d(16, 32, 5) + BatchNorm2d(32)
        "W2": 0.05 * jax.random.normal(ks[6], (32, 16, 5, 5), f32),
        "b2": 0.1 * jax.random.normal(ks[7], (32,), f32),
        "g2": 1.0 + 0.1 * jax.random.normal(ks[8], (32,), f32),
        "be2": 0.1 * jax.random.normal(ks[9], (32,), f32),
        "m2": 0.1 * jax.random.normal(ks[10], (32,), f32),
        "v2": jax.random.uniform(ks[11], (32,), f32, 0.5, 1.5),
        # out: Linear(32*4*4, 10) — torch weight layout (10, 512)
        "Wl": 0.05 * jax.random.normal(ks[12], (10, 512), f32),
        "bl": 0.1 * jax.random.normal(ks[13], (10,), f32),
    }


if __name__ == "__main__":
    key = jax.random.PRNGKey(0)
    k_p, k_x = jax.random.split(key)
    params = init_params(k_p)
    # MNIST-like input: batch=2, NCHW (2, 1, 28, 28); the 28x28 spatial size
    # is fixed by the Linear(32*4*4, 10) head of the module.
    x = jax.random.uniform(k_x, (2, 1, 28, 28), jnp.float32)

    logits = cnn_forward(x, params)
    jax.block_until_ready(logits)
    assert logits.shape == (2, 10) and logits.dtype == jnp.float32

    # Numerical check vs f32 XLA reference (bf16 matmul inputs, f32 accum).
    ref = cnn_reference(x, params)
    err = float(jnp.max(jnp.abs(logits - ref)))
    assert err < 6e-2, f"mismatch vs reference: max |diff| = {err}"
    print("KERNEL_OK")
</pallas_src>

<mosaic_0001>
module attributes {stable_mosaic.version = 11 : i64} {
  func.func @_conv_bn_relu_pool_kernel(%arg0: i32, %arg1: memref<4x24x200xbf16, #tpu.memory_space<vmem>>, %arg2: memref<200x128xbf16, #tpu.memory_space<vmem>>, %arg3: memref<1x128xf32, #tpu.memory_space<vmem>>, %arg4: memref<24x128xbf16, #tpu.memory_space<vmem>>) attributes {dimension_semantics = [#tpu.dimension_semantics<parallel>], iteration_bounds = array<i64: 2>, scalar_prefetch = 0 : i64, scratch_operands = 0 : i64, tpu.core_type = #tpu.core_type<tc>, window_params = [{transform_indices = @transform_0, window_bounds = array<i64: 4, 24, 200>}, {pipeline_mode = #tpu.pipeline_mode<synchronous>, transform_indices = @transform_1, window_bounds = array<i64: 200, 128>}, {pipeline_mode = #tpu.pipeline_mode<synchronous>, transform_indices = @transform_2, window_bounds = array<i64: 1, 128>}, {transform_indices = @transform_3, window_bounds = array<i64: 24, 128>}]} {
    %c0 = arith.constant 0 : index
    %c0_0 = arith.constant 0 : index
    %c0_1 = arith.constant 0 : index
    %0 = vector.load %arg1[%c0, %c0_0, %c0_1] : memref<4x24x200xbf16, #tpu.memory_space<vmem>>, vector<4x24x200xbf16>
    %1 = vector.shape_cast %0 : vector<4x24x200xbf16> to vector<96x200xbf16>
    %c0_2 = arith.constant 0 : index
    %c0_3 = arith.constant 0 : index
    %2 = vector.load %arg2[%c0_2, %c0_3] : memref<200x128xbf16, #tpu.memory_space<vmem>>, vector<200x128xbf16>
    %cst = arith.constant dense<0.000000e+00> : vector<96x128xf32>
    %3 = tpu.matmul %1, %2, %cst {dimension_numbers = #tpu.dot_dimension_numbers<[1], [0], [0], [1], [0, 0, 1, 1], [], []>} : vector<96x200xbf16>, vector<200x128xbf16>, vector<96x128xf32> -> vector<96x128xf32>
    %4 = vector.shape_cast %3 : vector<96x128xf32> to vector<4x24x128xf32>
    %cst_4 = arith.constant dense<0xFF800000> : vector<24x128xf32>
    %5 = vector.multi_reduction <maximumf>, %4, %cst_4 [0] : vector<4x24x128xf32> to vector<24x128xf32>
    %c0_5 = arith.constant 0 : index
    %c0_6 = arith.constant 0 : index
    %6 = vector.load %arg3[%c0_5, %c0_6] : memref<1x128xf32, #tpu.memory_space<vmem>>, vector<1x128xf32>
    %7 = vector.broadcast %6 : vector<1x128xf32> to vector<24x128xf32>
    %8 = arith.addf %5, %7 : vector<24x128xf32>
    %cst_7 = arith.constant 0.000000e+00 : f32
    %9 = vector.broadcast %cst_7 : f32 to vector<24x128xf32>
    %10 = arith.maximumf %8, %9 : vector<24x128xf32>
    %11 = arith.truncf %10 : vector<24x128xf32> to vector<24x128xbf16>
    %c0_8 = arith.constant 0 : index
    %c0_9 = arith.constant 0 : index
    %12 = vector.load %arg4[%c0_8, %c0_9] : memref<24x128xbf16, #tpu.memory_space<vmem>>, vector<24x128xbf16>
    tpu.vector_store %arg4[%c0_8, %c0_9], %11 {strides = array<i32>} : memref<24x128xbf16, #tpu.memory_space<vmem>>, vector<24x128xbf16>,
    return
  }
  func.func @transform_0(%arg0: i32) -> (i32, i32, i32) {
    %c0_i32 = arith.constant 0 : i32
    %c0_i32_0 = arith.constant 0 : i32
    %c0_i32_1 = arith.constant 0 : i32
    return %c0_i32, %arg0, %c0_i32_0 : i32, i32, i32
  }
  func.func @transform_1(%arg0: i32) -> (i32, i32) {
    %c0_i32 = arith.constant 0 : i32
    %c0_i32_0 = arith.constant 0 : i32
    %c0_i32_1 = arith.constant 0 : i32
    return %c0_i32, %c0_i32_0 : i32, i32
  }
  func.func @transform_2(%arg0: i32) -> (i32, i32) {
    %c0_i32 = arith.constant 0 : i32
    %c0_i32_0 = arith.constant 0 : i32
    %c0_i32_1 = arith.constant 0 : i32
    return %c0_i32, %c0_i32_0 : i32, i32
  }
  func.func @transform_3(%arg0: i32) -> (i32, i32) {
    %c0_i32 = arith.constant 0 : i32
    %c0_i32_0 = arith.constant 0 : i32
    return %arg0, %c0_i32 : i32, i32
  }
}

module attributes {stable_mosaic.version = 11 : i64} {
  func.func @_conv_bn_relu_pool_kernel(%arg0: i32, %arg1: memref<4x8x1600xbf16, #tpu.memory_space<vmem>>, %arg2: memref<1600x128xbf16, #tpu.memory_space<vmem>>, %arg3: memref<1x128xf32, #tpu.memory_space<vmem>>, %arg4: memref<8x128xf32, #tpu.memory_space<vmem>>) attributes {dimension_semantics = [#tpu.dimension_semantics<parallel>], iteration_bounds = array<i64: 1>, scalar_prefetch = 0 : i64, scratch_operands = 0 : i64, tpu.core_type = #tpu.core_type<tc>, window_params = [{transform_indices = @transform_0, window_bounds = array<i64: 4, 8, 1600>}, {pipeline_mode = #tpu.pipeline_mode<synchronous>, transform_indices = @transform_1, window_bounds = array<i64: 1600, 128>}, {pipeline_mode = #tpu.pipeline_mode<synchronous>, transform_indices = @transform_2, window_bounds = array<i64: 1, 128>}, {transform_indices = @transform_3, window_bounds = array<i64: 8, 128>}]} {
    %c0 = arith.constant 0 : index
    %c0_0 = arith.constant 0 : index
    %c0_1 = arith.constant 0 : index
    %0 = vector.load %arg1[%c0, %c0_0, %c0_1] : memref<4x8x1600xbf16, #tpu.memory_space<vmem>>, vector<4x8x1600xbf16>
    %1 = vector.shape_cast %0 : vector<4x8x1600xbf16> to vector<32x1600xbf16>
    %c0_2 = arith.constant 0 : index
    %c0_3 = arith.constant 0 : index
    %2 = vector.load %arg2[%c0_2, %c0_3] : memref<1600x128xbf16, #tpu.memory_space<vmem>>, vector<1600x128xbf16>
    %cst = arith.constant dense<0.000000e+00> : vector<32x128xf32>
    %3 = tpu.matmul %1, %2, %cst {dimension_numbers = #tpu.dot_dimension_numbers<[1], [0], [0], [1], [0, 0, 1, 1], [], []>} : vector<32x1600xbf16>, vector<1600x128xbf16>, vector<32x128xf32> -> vector<32x128xf32>
    %4 = vector.shape_cast %3 : vector<32x128xf32> to vector<4x8x128xf32>
    %cst_4 = arith.constant dense<0xFF800000> : vector<8x128xf32>
    %5 = vector.multi_reduction <maximumf>, %4, %cst_4 [0] : vector<4x8x128xf32> to vector<8x128xf32>
    %c0_5 = arith.constant 0 : index
    %c0_6 = arith.constant 0 : index
    %6 = vector.load %arg3[%c0_5, %c0_6] : memref<1x128xf32, #tpu.memory_space<vmem>>, vector<1x128xf32>
    %7 = vector.broadcast %6 : vector<1x128xf32> to vector<8x128xf32>
    %8 = arith.addf %5, %7 : vector<8x128xf32>
    %cst_7 = arith.constant 0.000000e+00 : f32
    %9 = vector.broadcast %cst_7 : f32 to vector<8x128xf32>
    %10 = arith.maximumf %8, %9 : vector<8x128xf32>
    %c0_8 = arith.constant 0 : index
    %c0_9 = arith.constant 0 : index
    %11 = vector.load %arg4[%c0_8, %c0_9] : memref<8x128xf32, #tpu.memory_space<vmem>>, vector<8x128xf32>
    tpu.vector_store %arg4[%c0_8, %c0_9], %10 {strides = array<i32>} : memref<8x128xf32, #tpu.memory_space<vmem>>, vector<8x128xf32>,
    return
  }
  func.func @transform_0(%arg0: i32) -> (i32, i32, i32) {
    %c0_i32 = arith.constant 0 : i32
    %c0_i32_0 = arith.constant 0 : i32
    %c0_i32_1 = arith.constant 0 : i32
    return %c0_i32, %arg0, %c0_i32_0 : i32, i32, i32
  }
  func.func @transform_1(%arg0: i32) -> (i32, i32) {
    %c0_i32 = arith.constant 0 : i32
    %c0_i32_0 = arith.constant 0 : i32
    %c0_i32_1 = arith.constant 0 : i32
    return %c0_i32, %c0_i32_0 : i32, i32
  }
  func.func @transform_2(%arg0: i32) -> (i32, i32) {
    %c0_i32 = arith.constant 0 : i32
    %c0_i32_0 = arith.constant 0 : i32
    %c0_i32_1 = arith.constant 0 : i32
    return %c0_i32, %c0_i32_0 : i32, i32
  }
  func.func @transform_3(%arg0: i32) -> (i32, i32) {
    %c0_i32 = arith.constant 0 : i32
    %c0_i32_0 = arith.constant 0 : i32
    return %arg0, %c0_i32 : i32, i32
  }
}

</mosaic_0001>

<llo_original>
// kernel: tile.13
$region0: #{tile.13}
  #allocation0 [shape = 's32[1]{0}', space=sflag, size = 0x4, scoped, tag = 'scoped memory for tile.13']
  %s0 = inlined_call_operand.vmem [shape: f32[16], index: 0, kind: input, shape index: {}]
  %s1 = inlined_call_operand.vmem [shape: f32[8,16], index: 1, kind: output, shape index: {}]
  // Predicated region
  $region2: #{tile.13} parent=0 // pred_check
    _
  $region3: #{tile.13} parent=0 // pred_check_branch
    %3 = sbr.rel (0) target = $region5
  $region4: #{tile.13} parent=0 // pred_region
    _
  $region5: #{tile.13} parent=0 // pred_fallthru
    _
  %v4 = vld [vmem:[%s0] ss:$0 sm:$0xff]
  %5 = vst [vmem:[%s1] sm:$0xff] %v4

// kernel: tile.14
$region0: #{tile.14}
  %s0 = inlined_call_operand.vmem [shape: f32[8,16], index: 0, kind: input, shape index: {}]
  %s1 = inlined_call_operand.vmem [shape: f32[1,128], index: 1, kind: output, shape index: {}]
  $region1: #{tile.14} parent=0
    #allocation0 [shape = 'u8[4096]{0}', space=vmem, size = 0x1000, scoped, tag = 'scoped mem for output reshape']
    %v2 = vld [vmem:[%s0] sm:$0x1]
    %vm3 = vcmask 130048
    %4 = vst.msk [vmem:[#allocation0] sm:$0x1] %vm3, %v2
    %s5 = scalar_lea.vmem %s0, 7
    %v6 = vld [vmem:[%s5] sm:$0x1]
    %7 = vrot.lane.b32.xlu0 %v6, 112
    %v8 = vpop.permute.xlu0 %7
    %vm9 = vcmask 1048448
    %10 = vst.msk [vmem:[#allocation0] sm:$0x1] %vm9, %v8
    %s11 = scalar_lea.vmem %s0, 6
    %v12 = vld [vmem:[%s11] sm:$0x1]
    %13 = vrot.lane.b32.xlu0 %v12, 96
    %v14 = vpop.permute.xlu0 %13
    %vm15 = vcmask 917248
    %16 = vst.msk [vmem:[#allocation0] sm:$0x1] %vm15, %v14
    %s17 = scalar_lea.vmem %s0, 5
    %v18 = vld [vmem:[%s17] sm:$0x1]
    %19 = vrot.lane.b32.xlu0 %v18, 80
    %v20 = vpop.permute.xlu0 %19
    %vm21 = vcmask 786048
    %22 = vst.msk [vmem:[#allocation0] sm:$0x1] %vm21, %v20
    %s23 = scalar_lea.vmem %s0, 4
    %v24 = vld [vmem:[%s23] sm:$0x1]
    %25 = vrot.lane.b32.xlu0 %v24, 64
    %v26 = vpop.permute.xlu0 %25
    %vm27 = vcmask 654848
    %28 = vst.msk [vmem:[#allocation0] sm:$0x1] %vm27, %v26
    %s29 = scalar_lea.vmem %s0, 3
    %v30 = vld [vmem:[%s29] sm:$0x1]
    %31 = vrot.lane.b32.xlu0 %v30, 48
    %v32 = vpop.permute.xlu0 %31
    %vm33 = vcmask 523648
    %34 = vst.msk [vmem:[#allocation0] sm:$0x1] %vm33, %v32
    %s35 = scalar_lea.vmem %s0, 2
    %v36 = vld [vmem:[%s35] sm:$0x1]
    %37 = vrot.lane.b32.xlu0 %v36, 32
    %v38 = vpop.permute.xlu0 %37
    %vm39 = vcmask 392448
    %40 = vst.msk [vmem:[#allocation0] sm:$0x1] %vm39, %v38
    %s41 = scalar_lea.vmem %s0, 1
    %v42 = vld [vmem:[%s41] sm:$0x1]
    %43 = vrot.lane.b32.xlu0 %v42, 16
    %v44 = vpop.permute.xlu0 %43
    %vm45 = vcmask 261248
    %46 = vst.msk [vmem:[#allocation0] sm:$0x1] %vm45, %v44
    %s48 = ssub.s32 2, 1
    %v49 = vld [vmem:[#allocation0] sm:%s48]
    %s51 = ssub.s32 2, 1
    %52 = vst [vmem:[%s1] sm:%s51] %v49

// kernel: cnn_forward.2
$region0: #{cnn_forward.2}
  #allocation0 [shape = 'u32[]', space=smem, size = 0x4, offset = 0x4, fixed_abs, tag = 'smem constant byte address 0x4 - core index']
  #allocation1 [shape = 'u32[72,128]{1,0:T(1,128)}', space=vmem, size = 0x9000, scoped, tag = 'internal scratch']
  %s0 = inlined_call_operand.vmem [shape: bf16[4,48,200], index: 0, kind: input, shape index: {}]
  %s1 = inlined_call_operand.vmem [shape: bf16[200,128], index: 1, kind: input, shape index: {}]
  %s2 = inlined_call_operand.vmem [shape: f32[1,128], index: 2, kind: input, shape index: {}]
  %s3 = inlined_call_operand.vmem [shape: bf16[48,128], index: 3, kind: output, shape index: {}]
  %s4 = sld [smem:[#allocation0]]
  $region83: #{cnn_forward.2} parent=0
    _
  %s6 = ssub.s32 1, %s4
  %s7 = scalar_select 0, %s6, %s4
  $region1: #{cnn_forward.2} parent=0
    #allocation2 [shape = 'u8[98304]{0}', space=vmem, size = 0x18000, scoped, tag = 'input window, operand 0']
    loop: start=0, step=1, limit=4
    $region2: #{cnn_forward.2} parent=1 // loop_pre_header
      _
    $region3: #{cnn_forward.2} parent=1 // loop_header
      %s9 = sphi 0, %s13
      %p10 = scmp.ge.s32.totalorder %s9, 4
      %s19 = sphi 0, %s21
      %s22 = sphi 0, %s19
      %s23 = sphi 0, %s22
      %s39 = sphi 0, %s23
      %s43 = sphi 0, %s43
      %s45 = sphi 0, %s43
      %s46 = sphi 0, %s45
      %s60 = sphi 0, %s46
      %s64 = sphi 0, %s64
      %s66 = sphi 0, %s64
      %s67 = sphi 0, %s66
      %s81 = sphi 0, %s67
      %s87 = sphi 0, %s89
      %s90 = sphi 0, %s87
      %s91 = sphi 0, %s90
      %s107 = sphi 0, %s91
    $region4: #{cnn_forward.2} parent=1 // loop_header_branch
      %12 = sbr.rel (%p10) target = $region8
    $region5: #{cnn_forward.2} parent=1 // loop_body
      %s14 = ssub.s32 %s9, 1
      %s15 = ssub.s32 %s9, 2
      %s16 = sadd.s32 %s9, 1
      %s17 = ssub.s32 %s9, %s16
      %p18 = scmp.eq.s32.totalorder %s17, 0
      %s20 = sadd.s32 %s19, 1
      %s21 = scalar_select %p18, %s19, %s20
      %p24 = pneg %p18
      %p25 = scmp.eq.s32.totalorder %s9, 1
      %p26 = por %p24, %p25
      %p27 = scmp.ne.s32.totalorder %s19, %s22
      %p28 = scmp.eq.s32.totalorder %s9, 0
      %p29 = por %p27, %p28
      %p30 = scmp.ne.s32.totalorder %s19, %s22
      %p31 = scmp.eq.s32.totalorder %s14, 1
      %p32 = por %p30, %p31
      %p33 = scmp.ne.s32.totalorder %s22, %s23
      %p34 = scmp.eq.s32.totalorder %s14, 0
      %p35 = por %p33, %p34
      %p36 = scmp.ne.s32.totalorder %s22, %s23
      %p37 = scmp.eq.s32.totalorder %s15, 1
      %p38 = por %p36, %p37
      %p40 = scmp.ne.s32.totalorder %s23, %s39
      %p41 = scmp.eq.s32.totalorder %s15, 0
      %p42 = por %p40, %p41
      %s44 = sadd.s32 %s43, 1
      %p47 = scmp.eq.s32.totalorder %s9, 1
      %p48 = scmp.ne.s32.totalorder %s43, %s45
      %p49 = scmp.eq.s32.totalorder %s9, 0
      %p50 = por %p48, %p49
      %p51 = scmp.ne.s32.totalorder %s43, %s45
      %p52 = scmp.eq.s32.totalorder %s14, 1
      %p53 = por %p51, %p52
      %p54 = scmp.ne.s32.totalorder %s45, %s46
      %p55 = scmp.eq.s32.totalorder %s14, 0
      %p56 = por %p54, %p55
      %p57 = scmp.ne.s32.totalorder %s45, %s46
      %p58 = scmp.eq.s32.totalorder %s15, 1
      %p59 = por %p57, %p58
      %p61 = scmp.ne.s32.totalorder %s46, %s60
      %p62 = scmp.eq.s32.totalorder %s15, 0
      %p63 = por %p61, %p62
      %s65 = sadd.s32 %s64, 1
      %p68 = scmp.eq.s32.totalorder %s9, 1
      %p69 = scmp.ne.s32.totalorder %s64, %s66
      %p70 = scmp.eq.s32.totalorder %s9, 0
      %p71 = por %p69, %p70
      %p72 = scmp.ne.s32.totalorder %s64, %s66
      %p73 = scmp.eq.s32.totalorder %s14, 1
      %p74 = por %p72, %p73
      %p75 = scmp.ne.s32.totalorder %s66, %s67
      %p76 = scmp.eq.s32.totalorder %s14, 0
      %p77 = por %p75, %p76
      %p78 = scmp.ne.s32.totalorder %s66, %s67
      %p79 = scmp.eq.s32.totalorder %s15, 1
      %p80 = por %p78, %p79
      %p82 = scmp.ne.s32.totalorder %s67, %s81
      %p83 = scmp.eq.s32.totalorder %s15, 0
      %p84 = por %p82, %p83
      %s85 = ssub.s32 %s9, %s16
      %p86 = scmp.eq.s32.totalorder %s85, 0
      %s88 = sadd.s32 %s87, 1
      %s89 = scalar_select %p86, %s87, %s88
      %p92 = pneg %p86
      %p93 = scmp.eq.s32.totalorder %s9, 1
      %p94 = por %p92, %p93
      %p95 = scmp.ne.s32.totalorder %s87, %s90
      %p96 = scmp.eq.s32.totalorder %s9, 0
      %p97 = por %p95, %p96
      %p98 = scmp.ne.s32.totalorder %s87, %s90
      %p99 = scmp.eq.s32.totalorder %s14, 1
      %p100 = por %p98, %p99
      %p101 = scmp.ne.s32.totalorder %s90, %s91
      %p102 = scmp.eq.s32.totalorder %s14, 0
      %p103 = por %p101, %p102
      %p104 = scmp.ne.s32.totalorder %s90, %s91
      %p105 = scmp.eq.s32.totalorder %s15, 1
      %p106 = por %p104, %p105
      %p108 = scmp.ne.s32.totalorder %s91, %s107
      %p109 = scmp.eq.s32.totalorder %s15, 0
      %p110 = por %p108, %p109
      %p111 = scmp.le.s32.totalorder 1, %s9
      %p112 = scmp.lt.s32.totalorder %s9, 3
      %p113 = pnand %p111, %p112
      %p114 = pneg %p113
      // Predicated region
      $region9: #{cnn_forward.2} parent=5 // pred_check
        _
      $region10: #{cnn_forward.2} parent=5 // pred_check_branch
        %116 = sbr.rel (%p113) target = $region12
      $region11: #{cnn_forward.2} parent=5 // pred_region
        %s117 = ssub.s32 %s9, 1
        // Predicated region
        $region13: #{cnn_forward.2} parent=11 // pred_check
          %p118 = pneg %p56
        $region14: #{cnn_forward.2} parent=11 // pred_check_branch
          %120 = sbr.rel (%p118) target = $region16
        $region15: #{cnn_forward.2} parent=11 // pred_region
          _
        $region16: #{cnn_forward.2} parent=11 // pred_fallthru
          _
        // Predicated region
        $region17: #{cnn_forward.2} parent=11 // pred_check
          %p121 = pneg %p77
        $region18: #{cnn_forward.2} parent=11 // pred_check_branch
          %123 = sbr.rel (%p121) target = $region20
        $region19: #{cnn_forward.2} parent=11 // pred_region
          _
        $region20: #{cnn_forward.2} parent=11 // pred_fallthru
          _
      $region12: #{cnn_forward.2} parent=5 // pred_fallthru
        _
      %p124 = scmp.lt.s32.totalorder %s9, 2
      // Predicated region
      $region21: #{cnn_forward.2} parent=5 // pred_check
        %p125 = pneg %p124
      $region22: #{cnn_forward.2} parent=5 // pred_check_branch
        %127 = sbr.rel (%p125) target = $region24
      $region23: #{cnn_forward.2} parent=5 // pred_region
        // Predicated region
        $region25: #{cnn_forward.2} parent=23 // pred_check
          %p128 = pneg %p29
        $region26: #{cnn_forward.2} parent=23 // pred_check_branch
          %130 = sbr.rel (%p128) target = $region28
        $region27: #{cnn_forward.2} parent=23 // pred_region
          %s131 = sand.u32 %s19, 1
          %s132 = sand.u32 %s19, 1
          %s133 = smul.addr %s132, 96
          %s134 = scalar_lea.vmem [#allocation2], %s133
          %s135 = smul.u32 3, %s9
          %s136 = smul.addr %s135, 2
          %s137 = smul.addr %s136, 4
          %s138 = scalar_lea.vmem %s0, %s137
          // Predicated region
          $region29: #{cnn_forward.2} parent=27 // pred_check
            _
          $region30: #{cnn_forward.2} parent=27 // pred_check_branch
            %140 = sbr.rel (0) target = $region32
          $region31: #{cnn_forward.2} parent=27 // pred_region
            // Predicated region
            $region33: #{cnn_forward.2} parent=31 // pred_check
              _
            $region34: #{cnn_forward.2} parent=31 // pred_check_branch
              %142 = sbr.rel (0) target = $region36
            $region35: #{cnn_forward.2} parent=31 // pred_region
              // Predicated region
              $region48: #{cnn_forward.2} parent=35 // pred_check
                _
              $region49: #{cnn_forward.2} parent=35 // pred_check_branch
                %180 = sbr.rel (0) target = $region51
              $region50: #{cnn_forward.2} parent=35 // pred_region
                loop: start=0, step=1, limit=1
                $region52: #{cnn_forward.2} parent=50 // loop_pre_header
                  _
                $region53: #{cnn_forward.2} parent=50 // loop_header
                  %s182 = sphi 0, %s186
                  %p183 = scmp.ge.s32.totalorder %s182, 1
                  %s187 = sphi %s138, %s138
                  %s188 = sphi %s134, %s134
                $region54: #{cnn_forward.2} parent=50 // loop_header_branch
                  %185 = sbr.rel (%p183) target = $region58
                $region55: #{cnn_forward.2} parent=50 // loop_body
                  %v189 = vld [vmem:[%s187] sm:$0xff]
                  %190 = vst [vmem:[%s188] sm:$0xff] %v189
                  %v191 = vld [vmem:[%s187 + $0x8] sm:$0xff]
                  %192 = vst [vmem:[%s188 + $0x8] sm:$0xff] %v191
                  %v193 = vld [vmem:[%s187 + $0x10] sm:$0xff]
                  %194 = vst [vmem:[%s188 + $0x10] sm:$0xff] %v193
                  %v195 = vld [vmem:[%s187 + $0x30] sm:$0xff]
                  %196 = vst [vmem:[%s188 + $0x18] sm:$0xff] %v195
                  %v197 = vld [vmem:[%s187 + $0x38] sm:$0xff]
                  %198 = vst [vmem:[%s188 + $0x20] sm:$0xff] %v197
                  %v199 = vld [vmem:[%s187 + $0x40] sm:$0xff]
                  %200 = vst [vmem:[%s188 + $0x28] sm:$0xff] %v199
                  %v201 = vld [vmem:[%s187 + $0x60] sm:$0xff]
                  %202 = vst [vmem:[%s188 + $0x30] sm:$0xff] %v201
                  %v203 = vld [vmem:[%s187 + $0x68] sm:$0xff]
                  %204 = vst [vmem:[%s188 + $0x38] sm:$0xff] %v203
                  %v205 = vld [vmem:[%s187 + $0x70] sm:$0xff]
                  %206 = vst [vmem:[%s188 + $0x40] sm:$0xff] %v205
                  %v207 = vld [vmem:[%s187 + $0x90] sm:$0xff]
                  %208 = vst [vmem:[%s188 + $0x48] sm:$0xff] %v207
                  %v209 = vld [vmem:[%s187 + $0x98] sm:$0xff]
                  %210 = vst [vmem:[%s188 + $0x50] sm:$0xff] %v209
                  %v211 = vld [vmem:[%s187 + $0xa0] sm:$0xff]
                  %212 = vst [vmem:[%s188 + $0x58] sm:$0xff] %v211
                $region56: #{cnn_forward.2} parent=50 // loop_footer
                  %s186 = sadd.s32 1, %s182
                $region57: #{cnn_forward.2} parent=50 // loop_footer_branch
                  %181 = sbr.rel target = $region53
                $region58: #{cnn_forward.2} parent=50 // loop_exit
                  _
              $region51: #{cnn_forward.2} parent=35 // pred_fallthru
                _
              // Predicated region
              $region59: #{cnn_forward.2} parent=35 // pred_check
                _
              $region60: #{cnn_forward.2} parent=35 // pred_check_branch
                %214 = sbr.rel target = $region62
              $region61: #{cnn_forward.2} parent=35 // pred_region
                _
              $region62: #{cnn_forward.2} parent=35 // pred_fallthru
                _
            $region36: #{cnn_forward.2} parent=31 // pred_fallthru
              _
            // Predicated region
            $region37: #{cnn_forward.2} parent=31 // pred_check
              _
            $region38: #{cnn_forward.2} parent=31 // pred_check_branch
              %144 = sbr.rel target = $region40
            $region39: #{cnn_forward.2} parent=31 // pred_region
              %s146 = ssub.s32 256, 1
              loop: start=0, step=1, limit=1
              $region41: #{cnn_forward.2} parent=39 // loop_pre_header
                _
              $region42: #{cnn_forward.2} parent=39 // loop_header
                %s148 = sphi 0, %s152
                %p149 = scmp.ge.s32.totalorder %s148, 1
                %s153 = sphi %s138, %s138
                %s154 = sphi %s134, %s134
              $region43: #{cnn_forward.2} parent=39 // loop_header_branch
                %151 = sbr.rel (%p149) target = $region47
              $region44: #{cnn_forward.2} parent=39 // loop_body
                %v155 = vld [vmem:[%s153] sm:%s146]
                %156 = vst [vmem:[%s154] sm:%s146] %v155
                %v157 = vld [vmem:[%s153 + $0x8] sm:%s146]
                %158 = vst [vmem:[%s154 + $0x8] sm:%s146] %v157
                %v159 = vld [vmem:[%s153 + $0x10] sm:%s146]
                %160 = vst [vmem:[%s154 + $0x10] sm:%s146] %v159
                %v161 = vld [vmem:[%s153 + $0x30] sm:%s146]
                %162 = vst [vmem:[%s154 + $0x18] sm:%s146] %v161
                %v163 = vld [vmem:[%s153 + $0x38] sm:%s146]
                %164 = vst [vmem:[%s154 + $0x20] sm:%s146] %v163
                %v165 = vld [vmem:[%s153 + $0x40] sm:%s146]
                %166 = vst [vmem:[%s154 + $0x28] sm:%s146] %v165
                %v167 = vld [vmem:[%s153 + $0x60] sm:%s146]
                %168 = vst [vmem:[%s154 + $0x30] sm:%s146] %v167
                %v169 = vld [vmem:[%s153 + $0x68] sm:%s146]
                %170 = vst [vmem:[%s154 + $0x38] sm:%s146] %v169
                %v171 = vld [vmem:[%s153 + $0x70] sm:%s146]
                %172 = vst [vmem:[%s154 + $0x40] sm:%s146] %v171
                %v173 = vld [vmem:[%s153 + $0x90] sm:%s146]
                %174 = vst [vmem:[%s154 + $0x48] sm:%s146] %v173
                %v175 = vld [vmem:[%s153 + $0x98] sm:%s146]
                %176 = vst [vmem:[%s154 + $0x50] sm:%s146] %v175
                %v177 = vld [vmem:[%s153 + $0xa0] sm:%s146]
                %178 = vst [vmem:[%s154 + $0x58] sm:%s146] %v177
              $region45: #{cnn_forward.2} parent=39 // loop_footer
                %s152 = sadd.s32 1, %s148
              $region46: #{cnn_forward.2} parent=39 // loop_footer_branch
                %147 = sbr.rel target = $region42
              $region47: #{cnn_forward.2} parent=39 // loop_exit
                _
            $region40: #{cnn_forward.2} parent=31 // pred_fallthru
              _
          $region32: #{cnn_forward.2} parent=27 // pred_fallthru
            _
          %215 = vnop
        $region28: #{cnn_forward.2} parent=23 // pred_fallthru
          _
      $region24: #{cnn_forward.2} parent=5 // pred_fallthru
        _
      %p216 = scmp.le.s32.totalorder 1, %s9
      %p217 = scmp.lt.s32.totalorder %s9, 3
      %p218 = pnand %p216, %p217
      %p219 = pneg %p218
      // Predicated region
      $region63: #{cnn_forward.2} parent=5 // pred_check
        _
      $region64: #{cnn_forward.2} parent=5 // pred_check_branch
        %221 = sbr.rel (%p218) target = $region66
      $region65: #{cnn_forward.2} parent=5 // pred_region
        %s222 = ssub.s32 %s9, 1
        %s223 = sand.u32 %s22, 1
        %s224 = sand.u32 %s22, 1
        %s225 = smul.addr %s224, 96
        %s226 = scalar_lea.vmem [#allocation2], %s225
        // Predicated region
        $region67: #{cnn_forward.2} parent=65 // pred_check
          %p227 = pneg %p35
        $region68: #{cnn_forward.2} parent=65 // pred_check_branch
          %229 = sbr.rel (%p227) target = $region70
        $region69: #{cnn_forward.2} parent=65 // pred_region
          _
        $region70: #{cnn_forward.2} parent=65 // pred_fallthru
          _
        %s230 = sand.u32 %s22, 1
        %s231 = sand.u32 %s22, 1
        %s232 = smul.addr %s231, 96
        %s233 = scalar_lea.vmem [#allocation2], %s232
        %p234 = pneg %p35
        %p235 = pneg %p32
        %p236 = pneg %p56
        %p237 = pneg %p53
        %p238 = pneg %p77
        %p239 = pneg %p74
        %p240 = pneg %p103
        %p241 = pneg %p100
        %s242 = smul.u32 3, %s14
        %p243 = scmp.lt.s32.totalorder %s242, 5
        %s244 = scalar_select %p243, %s242, 5
        %s245 = smul.addr %s244, 4
        %s246 = scalar_lea.vmem %s3, %s245
        %s247 = smul.u32 3, %s14
        %s248 = smul.u32 3, %s14
        %p249 = scmp.lt.s32.totalorder %s248, 5
        %s250 = scalar_select %p249, %s248, 5
        %s251 = smul.addr %s250, 4
        %s252 = scalar_lea.vmem %s3, %s251
        %s253 = smul.u32 3, %s14
        %v255 = vld [vmem:[%s226] sm:$0xff]
        %v256 = vld [vmem:[%s226 + $0x8] sm:$0xff]
        %v257 = vld [vmem:[%s226 + $0x10] sm:$0xff]
        %v258 = vld [vmem:[%s226 + $0x18] sm:$0xff]
        %v259 = vld [vmem:[%s226 + $0x20] sm:$0xff]
        %v260 = vld [vmem:[%s226 + $0x28] sm:$0xff]
        %v261 = vld [vmem:[%s226 + $0x30] sm:$0xff]
        %v262 = vld [vmem:[%s226 + $0x38] sm:$0xff]
        %v263 = vld [vmem:[%s226 + $0x40] sm:$0xff]
        %v264 = vld [vmem:[%s226 + $0x48] sm:$0xff]
        %v265 = vld [vmem:[%s226 + $0x50] sm:$0xff]
        %v266 = vld [vmem:[%s226 + $0x58] sm:$0xff]
        %v267 = vld [vmem:[%s1] sm:$0xf]
        %v268 = vld [vmem:[%s1 + $0x4] sm:$0xf]
        %v269 = vld [vmem:[%s1 + $0x8] sm:$0xf]
        %v270 = vld [vmem:[%s1 + $0xc] sm:$0xf]
        %v271 = vld [vmem:[%s1 + $0x10] sm:$0xf]
        %v272 = vld [vmem:[%s1 + $0x14] sm:$0xf]
        %v273 = vld [vmem:[%s1 + $0x18] sm:$0xf]
        %v274 = vld [vmem:[%s1 + $0x1c] sm:$0xf]
        %v275 = vld [vmem:[%s1 + $0x20] sm:$0xf]
        %v276 = vld [vmem:[%s1 + $0x24] sm:$0xf]
        %v277 = vld [vmem:[%s1 + $0x28] sm:$0xf]
        %v278 = vld [vmem:[%s1 + $0x2c] sm:$0xf]
        %v279 = vld [vmem:[%s1 + $0x30] sm:$0xf]
        %v280 = vld [vmem:[%s1 + $0x34] sm:$0xf]
        %v281 = vld [vmem:[%s1 + $0x38] sm:$0xf]
        %v282 = vld [vmem:[%s1 + $0x3c] sm:$0xf]
        %v283 = vld [vmem:[%s1 + $0x40] sm:$0xf]
        %v284 = vld [vmem:[%s1 + $0x44] sm:$0xf]
        %v285 = vld [vmem:[%s1 + $0x48] sm:$0xf]
        %v286 = vld [vmem:[%s1 + $0x4c] sm:$0xf]
        %v287 = vld [vmem:[%s1 + $0x50] sm:$0xf]
        %v288 = vld [vmem:[%s1 + $0x54] sm:$0xf]
        %v289 = vld [vmem:[%s1 + $0x58] sm:$0xf]
        %v290 = vld [vmem:[%s1 + $0x5c] sm:$0xf]
        %v291 = vld [vmem:[%s1 + $0x60] sm:$0xf]
        %v304 = vunpack.c.l.b16 %v255
        %v305 = vunpack.c.h.b16 %v255
        %v306 = vunpack.c.l.b16 %v256
        %v307 = vunpack.c.h.b16 %v256
        %v308 = vunpack.c.l.b16 %v257
        %v309 = vunpack.c.h.b16 %v257
        %v310 = vunpack.c.l.b16 %v258
        %v311 = vunpack.c.h.b16 %v258
        %v312 = vunpack.c.l.b16 %v259
        %v313 = vunpack.c.h.b16 %v259
        %v314 = vunpack.c.l.b16 %v260
        %v315 = vunpack.c.h.b16 %v260
        %v316 = vunpack.c.l.b16 %v261
        %v317 = vunpack.c.h.b16 %v261
        %v318 = vunpack.c.l.b16 %v262
        %v319 = vunpack.c.h.b16 %v262
        %v320 = vunpack.c.l.b16 %v263
        %v321 = vunpack.c.h.b16 %v263
        %v322 = vunpack.c.l.b16 %v264
        %v323 = vunpack.c.h.b16 %v264
        %v324 = vunpack.c.l.b16 %v265
        %v325 = vunpack.c.h.b16 %v265
        %v326 = vunpack.c.l.b16 %v266
        %v327 = vunpack.c.h.b16 %v266
        %v328 = vpack.c.b16 %v306, %v304
        %v329 = vpack.c.b16 %v307, %v305
        %v330 = vpack.c.b16 %v310, %v308
        %v331 = vpack.c.b16 %v311, %v309
        %v332 = vpack.c.b16 %v314, %v312
        %v333 = vpack.c.b16 %v315, %v313
        %v334 = vpack.c.b16 %v318, %v316
        %v335 = vpack.c.b16 %v319, %v317
        %v336 = vpack.c.b16 %v322, %v320
        %v337 = vpack.c.b16 %v323, %v321
        %v338 = vpack.c.b16 %v326, %v324
        %v339 = vpack.c.b16 %v327, %v325
        %v371 = vunpack.c.l.b16 %v267
        %v372 = vunpack.c.l.b16 %v268
        %v373 = vunpack.c.l.b16 %v269
        %v374 = vunpack.c.l.b16 %v270
        %v375 = vunpack.c.l.b16 %v271
        %v376 = vunpack.c.l.b16 %v272
        %v377 = vunpack.c.l.b16 %v273
        %v378 = vunpack.c.l.b16 %v274
        %v379 = vunpack.c.l.b16 %v275
        %v380 = vunpack.c.l.b16 %v276
        %v381 = vunpack.c.l.b16 %v277
        %v382 = vunpack.c.l.b16 %v278
        %v383 = vunpack.c.l.b16 %v279
        %v384 = vunpack.c.l.b16 %v280
        %v385 = vunpack.c.l.b16 %v281
        %v386 = vunpack.c.l.b16 %v282
        %v387 = vunpack.c.l.b16 %v283
        %v388 = vunpack.c.l.b16 %v284
        %v389 = vunpack.c.l.b16 %v285
        %v390 = vunpack.c.l.b16 %v286
        %v391 = vunpack.c.l.b16 %v287
        %v392 = vunpack.c.l.b16 %v288
        %v393 = vunpack.c.l.b16 %v289
        %v394 = vunpack.c.l.b16 %v290
        %v395 = vunpack.c.l.b16 %v291
        %v396 = vpack.c.b16 %v372, %v371
        %v397 = vpack.c.b16 %v374, %v373
        %v398 = vpack.c.b16 %v376, %v375
        %v399 = vpack.c.b16 %v378, %v377
        %v400 = vpack.c.b16 %v380, %v379
        %v401 = vpack.c.b16 %v382, %v381
        %v402 = vpack.c.b16 %v384, %v383
        %v403 = vpack.c.b16 %v386, %v385
        %v404 = vpack.c.b16 %v388, %v387
        %v405 = vpack.c.b16 %v390, %v389
        %v406 = vpack.c.b16 %v392, %v391
        %v407 = vpack.c.b16 %v394, %v393
        %v408 = vpack.c.b16 %v395, %v395
        %vm421 = vcmask 588800
        %v423 = vsel %vm421, %v329, 0
        %v426 = vsel %vm421, %v331, 0
        %v429 = vsel %vm421, %v333, 0
        %v432 = vsel %vm421, %v335, 0
        %v435 = vsel %vm421, %v337, 0
        %v438 = vsel %vm421, %v339, 0
        %vm440 = vcmask 1043456
        %v442 = vsel %vm440, %v408, 0
        %444 = vmatpush.bf16.msra.mxu0 %v403
        %445 = vmatpush.bf16.msra.mxu0 %v402
        %446 = vmatpush.bf16.msra.mxu0 %v401
        %447 = vmatpush.bf16.msra.mxu0 %v400
        %448 = vmatpush.bf16.msra.mxu0 %v399
        %449 = vmatpush.bf16.msra.mxu0 %v398
        %450 = vmatpush.bf16.msra.mxu0 %v397
        %451 = vmatpush.bf16.msra.mxu0 %v396
        %452 = vmatmul.bf16.gmra.mxu0 %v328
        %v453 = vpop.f32.mrf.mxu0
        %v454 = vadd.f32 0.0, %v453
        %v455 = vpop.f32.mrf.mxu0
        %v456 = vadd.f32 0.0, %v455
        %457 = vmatmul.bf16.gmra.mxu0 %v330
        %v458 = vpop.f32.mrf.mxu0
        %v459 = vadd.f32 0.0, %v458
        %v460 = vpop.f32.mrf.mxu0
        %v461 = vadd.f32 0.0, %v460
        %462 = vmatmul.bf16.gmra.mxu0 %v332
        %v463 = vpop.f32.mrf.mxu0
        %v464 = vadd.f32 0.0, %v463
        %v465 = vpop.f32.mrf.mxu0
        %v466 = vadd.f32 0.0, %v465
        %467 = vmatmul.bf16.gmra.mxu0 %v334
        %v468 = vpop.f32.mrf.mxu0
        %v469 = vadd.f32 0.0, %v468
        %v470 = vpop.f32.mrf.mxu0
        %v471 = vadd.f32 0.0, %v470
        %472 = vmatmul.bf16.gmra.mxu0 %v336
        %v473 = vpop.f32.mrf.mxu0
        %v474 = vadd.f32 0.0, %v473
        %v475 = vpop.f32.mrf.mxu0
        %v476 = vadd.f32 0.0, %v475
        %477 = vmatmul.bf16.gmra.mxu0 %v338
        %v478 = vpop.f32.mrf.mxu0
        %v479 = vadd.f32 0.0, %v478
        %v480 = vpop.f32.mrf.mxu0
        %v481 = vadd.f32 0.0, %v480
        %482 = vdwg.mxu0
        %483 = vmatpush.bf16.msra.mxu0 0
        %484 = vmatpush.bf16.msra.mxu0 0
        %485 = vmatpush.bf16.msra.mxu0 0
        %486 = vmatpush.bf16.msra.mxu0 %v442
        %487 = vmatpush.bf16.msra.mxu0 %v407
        %488 = vmatpush.bf16.msra.mxu0 %v406
        %489 = vmatpush.bf16.msra.mxu0 %v405
        %490 = vmatpush.bf16.msra.mxu0 %v404
        %491 = vmatmul.bf16.gmra.mxu0 %v423
        %v492 = vpop.f32.mrf.mxu0
        %v493 = vadd.f32 %v454, %v492
        %v494 = vpop.f32.mrf.mxu0
        %v495 = vadd.f32 %v456, %v494
        %496 = vmatmul.bf16.gmra.mxu0 %v426
        %v497 = vpop.f32.mrf.mxu0
        %v498 = vadd.f32 %v459, %v497
        %v499 = vpop.f32.mrf.mxu0
        %v500 = vadd.f32 %v461, %v499
        %501 = vmatmul.bf16.gmra.mxu0 %v429
        %v502 = vpop.f32.mrf.mxu0
        %v503 = vadd.f32 %v464, %v502
        %v504 = vpop.f32.mrf.mxu0
        %v505 = vadd.f32 %v466, %v504
        %506 = vmatmul.bf16.gmra.mxu0 %v432
        %v507 = vpop.f32.mrf.mxu0
        %v508 = vadd.f32 %v469, %v507
        %v509 = vpop.f32.mrf.mxu0
        %v510 = vadd.f32 %v471, %v509
        %511 = vmatmul.bf16.gmra.mxu0 %v435
        %v512 = vpop.f32.mrf.mxu0
        %v513 = vadd.f32 %v474, %v512
        %v514 = vpop.f32.mrf.mxu0
        %v515 = vadd.f32 %v476, %v514
        %516 = vmatmul.bf16.gmra.mxu0 %v438
        %v517 = vpop.f32.mrf.mxu0
        %v518 = vadd.f32 %v479, %v517
        %v519 = vpop.f32.mrf.mxu0
        %v520 = vadd.f32 %v481, %v519
        %521 = vdwg.mxu0
        %v522 = vmax.f32 %v493, %v508
        %v523 = vmax.f32 %v500, %v515
        %v524 = vmax.f32 %v522, %v523
        %v525 = vmax.f32 %v495, %v510
        %v526 = vmax.f32 %v503, %v518
        %v527 = vmax.f32 %v525, %v526
        %v528 = vmax.f32 %v498, %v513
        %v529 = vmax.f32 %v505, %v520
        %v530 = vmax.f32 %v528, %v529
        %v531 = vld [vmem:[%s2] sm:$0x1]
        %v533 = vperm.slane %v531, 0
        %v535 = vadd.f32 %v524, %v533
        %v536 = vadd.f32 %v527, %v533
        %v537 = vadd.f32 %v530, %v533
        %v538 = vmax.f32 %v535, 0.0
        %v539 = vmax.f32 %v536, 0.0
        %v540 = vmax.f32 %v537, 0.0
        %v541 = vpack.c.bf16 %v538, %v538
        %v542 = vpack.c.bf16 %v539, %v539
        %v543 = vpack.c.bf16 %v540, %v540
        %544 = vst [vmem:[%s252] sm:$0xf] %v541
        %545 = vst [vmem:[%s252 + $0x4] sm:$0xf] %v542
        %546 = vst [vmem:[%s252 + $0x8] sm:$0xf] %v543
        %s547 = smul.u32 3, %s14
        %p548 = scmp.lt.s32.totalorder %s547, 5
        %s549 = scalar_select %p548, %s547, 5
        %s550 = smul.addr %s549, 4
        %s551 = scalar_lea.vmem %s3, %s550
        // Predicated region
        $region71: #{cnn_forward.2} parent=65 // pred_check
          %p552 = pneg %p100
        $region72: #{cnn_forward.2} parent=65 // pred_check_branch
          %554 = sbr.rel (%p552) target = $region74
        $region73: #{cnn_forward.2} parent=65 // pred_region
          %s555 = smul.u32 3, %s14
        $region74: #{cnn_forward.2} parent=65 // pred_fallthru
          _
      $region66: #{cnn_forward.2} parent=5 // pred_fallthru
        _
      %p556 = scmp.le.s32.totalorder 2, %s9
      // Predicated region
      $region75: #{cnn_forward.2} parent=5 // pred_check
        %p557 = pneg %p556
      $region76: #{cnn_forward.2} parent=5 // pred_check_branch
        %559 = sbr.rel (%p557) target = $region78
      $region77: #{cnn_forward.2} parent=5 // pred_region
        %s560 = ssub.s32 %s9, 2
        // Predicated region
        $region79: #{cnn_forward.2} parent=77 // pred_check
          %p561 = pneg %p106
        $region80: #{cnn_forward.2} parent=77 // pred_check_branch
          %563 = sbr.rel (%p561) target = $region82
        $region81: #{cnn_forward.2} parent=77 // pred_region
          %s564 = smul.u32 3, %s15
          %p565 = scmp.lt.s32.totalorder %s564, 5
          %s566 = scalar_select %p565, %s564, 5
          %s567 = smul.addr %s566, 4
          %s568 = scalar_lea.vmem %s3, %s567
        $region82: #{cnn_forward.2} parent=77 // pred_fallthru
          _
      $region78: #{cnn_forward.2} parent=5 // pred_fallthru
        _
    $region6: #{cnn_forward.2} parent=1 // loop_footer
      %s13 = sadd.s32 1, %s9
    $region7: #{cnn_forward.2} parent=1 // loop_footer_branch
      %8 = sbr.rel target = $region3
    $region8: #{cnn_forward.2} parent=1 // loop_exit
      _

// kernel: tile.18
$region0: #{tile.18}
  #allocation0 [shape = 's32[1]{0}', space=sflag, size = 0x4, scoped, tag = 'scoped memory for tile.18']
  %s0 = inlined_call_operand.vmem [shape: f32[32], index: 0, kind: input, shape index: {}]
  %s1 = inlined_call_operand.vmem [shape: f32[4,32], index: 1, kind: output, shape index: {}]
  // Predicated region
  $region2: #{tile.18} parent=0 // pred_check
    _
  $region3: #{tile.18} parent=0 // pred_check_branch
    %3 = sbr.rel (0) target = $region5
  $region4: #{tile.18} parent=0 // pred_region
    _
  $region5: #{tile.18} parent=0 // pred_fallthru
    _
  %v4 = vld [vmem:[%s0] ss:$0 sm:$0xff]
  %5 = vst [vmem:[%s1] sm:$0xf] %v4

// kernel: tile.19
$region0: #{tile.19}
  %s0 = inlined_call_operand.vmem [shape: f32[4,32], index: 0, kind: input, shape index: {}]
  %s1 = inlined_call_operand.vmem [shape: f32[1,128], index: 1, kind: output, shape index: {}]
  $region1: #{tile.19} parent=0
    #allocation0 [shape = 'u8[4096]{0}', space=vmem, size = 0x1000, scoped, tag = 'scoped mem for output reshape']
    #allocation1 [shape = 'u8[4096]{0}', space=vmem, size = 0x1000, scoped, tag = 'scoped mem for input reshape']
    %s3 = ssub.s32 16, 1
    %v4 = vld [vmem:[%s0] sm:%s3]
    %5 = vst [vmem:[#allocation1] sm:%s3] %v4
    %v6 = vld [vmem:[#allocation1] sm:$0x1]
    %vm7 = vcmask 261120
    %8 = vst.msk [vmem:[#allocation0] sm:$0x1] %vm7, %v6
    %s9 = scalar_lea.vmem [#allocation1], 3
    %v10 = vld [vmem:[%s9] sm:$0x1]
    %11 = vrot.lane.b32.xlu0 %v10, 96
    %v12 = vpop.permute.xlu0 %11
    %vm13 = vcmask 1048320
    %14 = vst.msk [vmem:[#allocation0] sm:$0x1] %vm13, %v12
    %s15 = scalar_lea.vmem [#allocation1], 2
    %v16 = vld [vmem:[%s15] sm:$0x1]
    %17 = vrot.lane.b32.xlu0 %v16, 64
    %v18 = vpop.permute.xlu0 %17
    %vm19 = vcmask 785920
    %20 = vst.msk [vmem:[#allocation0] sm:$0x1] %vm19, %v18
    %s21 = scalar_lea.vmem [#allocation1], 1
    %v22 = vld [vmem:[%s21] sm:$0x1]
    %23 = vrot.lane.b32.xlu0 %v22, 32
    %v24 = vpop.permute.xlu0 %23
    %vm25 = vcmask 523520
    %26 = vst.msk [vmem:[#allocation0] sm:$0x1] %vm25, %v24
    %s28 = ssub.s32 2, 1
    %v29 = vld [vmem:[#allocation0] sm:%s28]
    %s31 = ssub.s32 2, 1
    %32 = vst [vmem:[%s1] sm:%s31] %v29

// kernel: cnn_forward.3
$region0: #{cnn_forward.3}
  #allocation0 [shape = 'u32[]', space=smem, size = 0x4, offset = 0x4, fixed_abs, tag = 'smem constant byte address 0x4 - core index']
  #allocation1 [shape = 'u32[72,128]{1,0:T(1,128)}', space=vmem, size = 0x9000, scoped, tag = 'internal scratch']
  %s0 = inlined_call_operand.vmem [shape: bf16[4,8,1600], index: 0, kind: input, shape index: {}]
  %s1 = inlined_call_operand.vmem [shape: bf16[1600,128], index: 1, kind: input, shape index: {}]
  %s2 = inlined_call_operand.vmem [shape: f32[1,128], index: 2, kind: input, shape index: {}]
  %s3 = inlined_call_operand.vmem [shape: f32[8,128], index: 3, kind: output, shape index: {}]
  %s4 = sld [smem:[#allocation0]]
  $region22: #{cnn_forward.3} parent=0
    _
  %s6 = ssub.s32 1, %s4
  %s7 = scalar_select 0, %s6, %s4
  // Predicated region
  $region2: #{cnn_forward.3} parent=0 // pred_check
    _
  $region3: #{cnn_forward.3} parent=0 // pred_check_branch
    %9 = sbr.rel (0) target = $region5
  $region4: #{cnn_forward.3} parent=0 // pred_region
    _
  $region5: #{cnn_forward.3} parent=0 // pred_fallthru
    _
  // Predicated region
  $region6: #{cnn_forward.3} parent=0 // pred_check
    _
  $region7: #{cnn_forward.3} parent=0 // pred_check_branch
    %11 = sbr.rel (0) target = $region9
  $region8: #{cnn_forward.3} parent=0 // pred_region
    _
  $region9: #{cnn_forward.3} parent=0 // pred_fallthru
    _
  // Predicated region
  $region10: #{cnn_forward.3} parent=0 // pred_check
    _
  $region11: #{cnn_forward.3} parent=0 // pred_check_branch
    %13 = sbr.rel (0) target = $region13
  $region12: #{cnn_forward.3} parent=0 // pred_region
    _
  $region13: #{cnn_forward.3} parent=0 // pred_fallthru
    _
  %v15 = vld [vmem:[%s0] sm:$0xff]
  %v16 = vld [vmem:[%s0 + $0x8] sm:$0xff]
  %v17 = vld [vmem:[%s0 + $0x10] sm:$0xff]
  %v18 = vld [vmem:[%s0 + $0x18] sm:$0xff]
  %v19 = vld [vmem:[%s0 + $0x20] sm:$0xff]
  %v20 = vld [vmem:[%s0 + $0x28] sm:$0xff]
  %v21 = vld [vmem:[%s0 + $0x30] sm:$0xf]
  %v22 = vld [vmem:[%s0 + $0x34] sm:$0xff]
  %v23 = vld [vmem:[%s0 + $0x3c] sm:$0xff]
  %v24 = vld [vmem:[%s0 + $0x44] sm:$0xff]
  %v25 = vld [vmem:[%s0 + $0x4c] sm:$0xff]
  %v26 = vld [vmem:[%s0 + $0x54] sm:$0xff]
  %v27 = vld [vmem:[%s0 + $0x5c] sm:$0xff]
  %v28 = vld [vmem:[%s0 + $0x64] sm:$0xf]
  %v29 = vld [vmem:[%s0 + $0x68] sm:$0xff]
  %v30 = vld [vmem:[%s0 + $0x70] sm:$0xff]
  %v31 = vld [vmem:[%s0 + $0x78] sm:$0xff]
  %v32 = vld [vmem:[%s0 + $0x80] sm:$0xff]
  %v33 = vld [vmem:[%s0 + $0x88] sm:$0xff]
  %v34 = vld [vmem:[%s0 + $0x90] sm:$0xff]
  %v35 = vld [vmem:[%s0 + $0x98] sm:$0xf]
  %v36 = vld [vmem:[%s0 + $0x9c] sm:$0xff]
  %v37 = vld [vmem:[%s0 + $0xa4] sm:$0xff]
  %v38 = vld [vmem:[%s0 + $0xac] sm:$0xff]
  %v39 = vld [vmem:[%s0 + $0xb4] sm:$0xff]
  %v40 = vld [vmem:[%s0 + $0xbc] sm:$0xff]
  %v41 = vld [vmem:[%s0 + $0xc4] sm:$0xff]
  %v42 = vld [vmem:[%s0 + $0xcc] sm:$0xf]
  %v43 = vld [vmem:[%s1] sm:$0xf]
  %v44 = vld [vmem:[%s1 + $0x4] sm:$0xf]
  %v45 = vld [vmem:[%s1 + $0x8] sm:$0xf]
  %v46 = vld [vmem:[%s1 + $0xc] sm:$0xf]
  %v47 = vld [vmem:[%s1 + $0x10] sm:$0xf]
  %v48 = vld [vmem:[%s1 + $0x14] sm:$0xf]
  %v49 = vld [vmem:[%s1 + $0x18] sm:$0xf]
  %v50 = vld [vmem:[%s1 + $0x1c] sm:$0xf]
  %v51 = vld [vmem:[%s1 + $0x20] sm:$0xf]
  %v52 = vld [vmem:[%s1 + $0x24] sm:$0xf]
  %v53 = vld [vmem:[%s1 + $0x28] sm:$0xf]
  %v54 = vld [vmem:[%s1 + $0x2c] sm:$0xf]
  %v55 = vld [vmem:[%s1 + $0x30] sm:$0xf]
  %v56 = vld [vmem:[%s1 + $0x34] sm:$0xf]
  %v57 = vld [vmem:[%s1 + $0x38] sm:$0xf]
  %v58 = vld [vmem:[%s1 + $0x3c] sm:$0xf]
  %v59 = vld [vmem:[%s1 + $0x40] sm:$0xf]
  %v60 = vld [vmem:[%s1 + $0x44] sm:$0xf]
  %v61 = vld [vmem:[%s1 + $0x48] sm:$0xf]
  %v62 = vld [vmem:[%s1 + $0x4c] sm:$0xf]
  %v63 = vld [vmem:[%s1 + $0x50] sm:$0xf]
  %v64 = vld [vmem:[%s1 + $0x54] sm:$0xf]
  %v65 = vld [vmem:[%s1 + $0x58] sm:$0xf]
  %v66 = vld [vmem:[%s1 + $0x5c] sm:$0xf]
  %v67 = vld [vmem:[%s1 + $0x60] sm:$0xf]
  %v68 = vld [vmem:[%s1 + $0x64] sm:$0xf]
  %v69 = vld [vmem:[%s1 + $0x68] sm:$0xf]
  %v70 = vld [vmem:[%s1 + $0x6c] sm:$0xf]
  %v71 = vld [vmem:[%s1 + $0x70] sm:$0xf]
  %v72 = vld [vmem:[%s1 + $0x74] sm:$0xf]
  %v73 = vld [vmem:[%s1 + $0x78] sm:$0xf]
  %v74 = vld [vmem:[%s1 + $0x7c] sm:$0xf]
  %v75 = vld [vmem:[%s1 + $0x80] sm:$0xf]
  %v76 = vld [vmem:[%s1 + $0x84] sm:$0xf]
  %v77 = vld [vmem:[%s1 + $0x88] sm:$0xf]
  %v78 = vld [vmem:[%s1 + $0x8c] sm:$0xf]
  %v79 = vld [vmem:[%s1 + $0x90] sm:$0xf]
  %v80 = vld [vmem:[%s1 + $0x94] sm:$0xf]
  %v81 = vld [vmem:[%s1 + $0x98] sm:$0xf]
  %v82 = vld [vmem:[%s1 + $0x9c] sm:$0xf]
  %v83 = vld [vmem:[%s1 + $0xa0] sm:$0xf]
  %v84 = vld [vmem:[%s1 + $0xa4] sm:$0xf]
  %v85 = vld [vmem:[%s1 + $0xa8] sm:$0xf]
  %v86 = vld [vmem:[%s1 + $0xac] sm:$0xf]
  %v87 = vld [vmem:[%s1 + $0xb0] sm:$0xf]
  %v88 = vld [vmem:[%s1 + $0xb4] sm:$0xf]
  %v89 = vld [vmem:[%s1 + $0xb8] sm:$0xf]
  %v90 = vld [vmem:[%s1 + $0xbc] sm:$0xf]
  %v91 = vld [vmem:[%s1 + $0xc0] sm:$0xf]
  %v92 = vld [vmem:[%s1 + $0xc4] sm:$0xf]
  %v93 = vld [vmem:[%s1 + $0xc8] sm:$0xf]
  %v94 = vld [vmem:[%s1 + $0xcc] sm:$0xf]
  %v95 = vld [vmem:[%s1 + $0xd0] sm:$0xf]
  %v96 = vld [vmem:[%s1 + $0xd4] sm:$0xf]
  %v97 = vld [vmem:[%s1 + $0xd8] sm:$0xf]
  %v98 = vld [vmem:[%s1 + $0xdc] sm:$0xf]
  %v99 = vld [vmem:[%s1 + $0xe0] sm:$0xf]
  %v100 = vld [vmem:[%s1 + $0xe4] sm:$0xf]
  %v101 = vld [vmem:[%s1 + $0xe8] sm:$0xf]
  %v102 = vld [vmem:[%s1 + $0xec] sm:$0xf]
  %v103 = vld [vmem:[%s1 + $0xf0] sm:$0xf]
  %v104 = vld [vmem:[%s1 + $0xf4] sm:$0xf]
  %v105 = vld [vmem:[%s1 + $0xf8] sm:$0xf]
  %v106 = vld [vmem:[%s1 + $0xfc] sm:$0xf]
  %v107 = vld [vmem:[%s1 + $0x100] sm:$0xf]
  %v108 = vld [vmem:[%s1 + $0x104] sm:$0xf]
  %v109 = vld [vmem:[%s1 + $0x108] sm:$0xf]
  %v110 = vld [vmem:[%s1 + $0x10c] sm:$0xf]
  %v111 = vld [vmem:[%s1 + $0x110] sm:$0xf]
  %v112 = vld [vmem:[%s1 + $0x114] sm:$0xf]
  %v113 = vld [vmem:[%s1 + $0x118] sm:$0xf]
  %v114 = vld [vmem:[%s1 + $0x11c] sm:$0xf]
  %v115 = vld [vmem:[%s1 + $0x120] sm:$0xf]
  %v116 = vld [vmem:[%s1 + $0x124] sm:$0xf]
  %v117 = vld [vmem:[%s1 + $0x128] sm:$0xf]
  %v118 = vld [vmem:[%s1 + $0x12c] sm:$0xf]
  %v119 = vld [vmem:[%s1 + $0x130] sm:$0xf]
  %v120 = vld [vmem:[%s1 + $0x134] sm:$0xf]
  %v121 = vld [vmem:[%s1 + $0x138] sm:$0xf]
  %v122 = vld [vmem:[%s1 + $0x13c] sm:$0xf]
  %v123 = vld [vmem:[%s1 + $0x140] sm:$0xf]
  %v124 = vld [vmem:[%s1 + $0x144] sm:$0xf]
  %v125 = vld [vmem:[%s1 + $0x148] sm:$0xf]
  %v126 = vld [vmem:[%s1 + $0x14c] sm:$0xf]
  %v127 = vld [vmem:[%s1 + $0x150] sm:$0xf]
  %v128 = vld [vmem:[%s1 + $0x154] sm:$0xf]
  %v129 = vld [vmem:[%s1 + $0x158] sm:$0xf]
  %v130 = vld [vmem:[%s1 + $0x15c] sm:$0xf]
  %v131 = vld [vmem:[%s1 + $0x160] sm:$0xf]
  %v132 = vld [vmem:[%s1 + $0x164] sm:$0xf]
  %v133 = vld [vmem:[%s1 + $0x168] sm:$0xf]
  %v134 = vld [vmem:[%s1 + $0x16c] sm:$0xf]
  %v135 = vld [vmem:[%s1 + $0x170] sm:$0xf]
  %v136 = vld [vmem:[%s1 + $0x174] sm:$0xf]
  %v137 = vld [vmem:[%s1 + $0x178] sm:$0xf]
  %v138 = vld [vmem:[%s1 + $0x17c] sm:$0xf]
  %v139 = vld [vmem:[%s1 + $0x180] sm:$0xf]
  %v140 = vld [vmem:[%s1 + $0x184] sm:$0xf]
  %v141 = vld [vmem:[%s1 + $0x188] sm:$0xf]
  %v142 = vld [vmem:[%s1 + $0x18c] sm:$0xf]
  %v143 = vld [vmem:[%s1 + $0x190] sm:$0xf]
  %v144 = vld [vmem:[%s1 + $0x194] sm:$0xf]
  %v145 = vld [vmem:[%s1 + $0x198] sm:$0xf]
  %v146 = vld [vmem:[%s1 + $0x19c] sm:$0xf]
  %v147 = vld [vmem:[%s1 + $0x1a0] sm:$0xf]
  %v148 = vld [vmem:[%s1 + $0x1a4] sm:$0xf]
  %v149 = vld [vmem:[%s1 + $0x1a8] sm:$0xf]
  %v150 = vld [vmem:[%s1 + $0x1ac] sm:$0xf]
  %v151 = vld [vmem:[%s1 + $0x1b0] sm:$0xf]
  %v152 = vld [vmem:[%s1 + $0x1b4] sm:$0xf]
  %v153 = vld [vmem:[%s1 + $0x1b8] sm:$0xf]
  %v154 = vld [vmem:[%s1 + $0x1bc] sm:$0xf]
  %v155 = vld [vmem:[%s1 + $0x1c0] sm:$0xf]
  %v156 = vld [vmem:[%s1 + $0x1c4] sm:$0xf]
  %v157 = vld [vmem:[%s1 + $0x1c8] sm:$0xf]
  %v158 = vld [vmem:[%s1 + $0x1cc] sm:$0xf]
  %v159 = vld [vmem:[%s1 + $0x1d0] sm:$0xf]
  %v160 = vld [vmem:[%s1 + $0x1d4] sm:$0xf]
  %v161 = vld [vmem:[%s1 + $0x1d8] sm:$0xf]
  %v162 = vld [vmem:[%s1 + $0x1dc] sm:$0xf]
  %v163 = vld [vmem:[%s1 + $0x1e0] sm:$0xf]
  %v164 = vld [vmem:[%s1 + $0x1e4] sm:$0xf]
  %v165 = vld [vmem:[%s1 + $0x1e8] sm:$0xf]
  %v166 = vld [vmem:[%s1 + $0x1ec] sm:$0xf]
  %v167 = vld [vmem:[%s1 + $0x1f0] sm:$0xf]
  %v168 = vld [vmem:[%s1 + $0x1f4] sm:$0xf]
  %v169 = vld [vmem:[%s1 + $0x1f8] sm:$0xf]
  %v170 = vld [vmem:[%s1 + $0x1fc] sm:$0xf]
  %v171 = vld [vmem:[%s1 + $0x200] sm:$0xf]
  %v172 = vld [vmem:[%s1 + $0x204] sm:$0xf]
  %v173 = vld [vmem:[%s1 + $0x208] sm:$0xf]
  %v174 = vld [vmem:[%s1 + $0x20c] sm:$0xf]
  %v175 = vld [vmem:[%s1 + $0x210] sm:$0xf]
  %v176 = vld [vmem:[%s1 + $0x214] sm:$0xf]
  %v177 = vld [vmem:[%s1 + $0x218] sm:$0xf]
  %v178 = vld [vmem:[%s1 + $0x21c] sm:$0xf]
  %v179 = vld [vmem:[%s1 + $0x220] sm:$0xf]
  %v180 = vld [vmem:[%s1 + $0x224] sm:$0xf]
  %v181 = vld [vmem:[%s1 + $0x228] sm:$0xf]
  %v182 = vld [vmem:[%s1 + $0x22c] sm:$0xf]
  %v183 = vld [vmem:[%s1 + $0x230] sm:$0xf]
  %v184 = vld [vmem:[%s1 + $0x234] sm:$0xf]
  %v185 = vld [vmem:[%s1 + $0x238] sm:$0xf]
  %v186 = vld [vmem:[%s1 + $0x23c] sm:$0xf]
  %v187 = vld [vmem:[%s1 + $0x240] sm:$0xf]
  %v188 = vld [vmem:[%s1 + $0x244] sm:$0xf]
  %v189 = vld [vmem:[%s1 + $0x248] sm:$0xf]
  %v190 = vld [vmem:[%s1 + $0x24c] sm:$0xf]
  %v191 = vld [vmem:[%s1 + $0x250] sm:$0xf]
  %v192 = vld [vmem:[%s1 + $0x254] sm:$0xf]
  %v193 = vld [vmem:[%s1 + $0x258] sm:$0xf]
  %v194 = vld [vmem:[%s1 + $0x25c] sm:$0xf]
  %v195 = vld [vmem:[%s1 + $0x260] sm:$0xf]
  %v196 = vld [vmem:[%s1 + $0x264] sm:$0xf]
  %v197 = vld [vmem:[%s1 + $0x268] sm:$0xf]
  %v198 = vld [vmem:[%s1 + $0x26c] sm:$0xf]
  %v199 = vld [vmem:[%s1 + $0x270] sm:$0xf]
  %v200 = vld [vmem:[%s1 + $0x274] sm:$0xf]
  %v201 = vld [vmem:[%s1 + $0x278] sm:$0xf]
  %v202 = vld [vmem:[%s1 + $0x27c] sm:$0xf]
  %v203 = vld [vmem:[%s1 + $0x280] sm:$0xf]
  %v204 = vld [vmem:[%s1 + $0x284] sm:$0xf]
  %v205 = vld [vmem:[%s1 + $0x288] sm:$0xf]
  %v206 = vld [vmem:[%s1 + $0x28c] sm:$0xf]
  %v207 = vld [vmem:[%s1 + $0x290] sm:$0xf]
  %v208 = vld [vmem:[%s1 + $0x294] sm:$0xf]
  %v209 = vld [vmem:[%s1 + $0x298] sm:$0xf]
  %v210 = vld [vmem:[%s1 + $0x29c] sm:$0xf]
  %v211 = vld [vmem:[%s1 + $0x2a0] sm:$0xf]
  %v212 = vld [vmem:[%s1 + $0x2a4] sm:$0xf]
  %v213 = vld [vmem:[%s1 + $0x2a8] sm:$0xf]
  %v214 = vld [vmem:[%s1 + $0x2ac] sm:$0xf]
  %v215 = vld [vmem:[%s1 + $0x2b0] sm:$0xf]
  %v216 = vld [vmem:[%s1 + $0x2b4] sm:$0xf]
  %v217 = vld [vmem:[%s1 + $0x2b8] sm:$0xf]
  %v218 = vld [vmem:[%s1 + $0x2bc] sm:$0xf]
  %v219 = vld [vmem:[%s1 + $0x2c0] sm:$0xf]
  %v220 = vld [vmem:[%s1 + $0x2c4] sm:$0xf]
  %v221 = vld [vmem:[%s1 + $0x2c8] sm:$0xf]
  %v222 = vld [vmem:[%s1 + $0x2cc] sm:$0xf]
  %v223 = vld [vmem:[%s1 + $0x2d0] sm:$0xf]
  %v224 = vld [vmem:[%s1 + $0x2d4] sm:$0xf]
  %v225 = vld [vmem:[%s1 + $0x2d8] sm:$0xf]
  %v226 = vld [vmem:[%s1 + $0x2dc] sm:$0xf]
  %v227 = vld [vmem:[%s1 + $0x2e0] sm:$0xf]
  %v228 = vld [vmem:[%s1 + $0x2e4] sm:$0xf]
  %v229 = vld [vmem:[%s1 + $0x2e8] sm:$0xf]
  %v230 = vld [vmem:[%s1 + $0x2ec] sm:$0xf]
  %v231 = vld [vmem:[%s1 + $0x2f0] sm:$0xf]
  %v232 = vld [vmem:[%s1 + $0x2f4] sm:$0xf]
  %v233 = vld [vmem:[%s1 + $0x2f8] sm:$0xf]
  %v234 = vld [vmem:[%s1 + $0x2fc] sm:$0xf]
  %v235 = vld [vmem:[%s1 + $0x300] sm:$0xf]
  %v236 = vld [vmem:[%s1 + $0x304] sm:$0xf]
  %v237 = vld [vmem:[%s1 + $0x308] sm:$0xf]
  %v238 = vld [vmem:[%s1 + $0x30c] sm:$0xf]
  %v239 = vld [vmem:[%s1 + $0x310] sm:$0xf]
  %v240 = vld [vmem:[%s1 + $0x314] sm:$0xf]
  %v241 = vld [vmem:[%s1 + $0x318] sm:$0xf]
  %v242 = vld [vmem:[%s1 + $0x31c] sm:$0xf]
  %v271 = vunpack.c.l.b16 %v15
  %v272 = vunpack.c.h.b16 %v15
  %v273 = vunpack.c.l.b16 %v16
  %v274 = vunpack.c.h.b16 %v16
  %v275 = vunpack.c.l.b16 %v17
  %v276 = vunpack.c.h.b16 %v17
  %v277 = vunpack.c.l.b16 %v18
  %v278 = vunpack.c.h.b16 %v18
  %v279 = vunpack.c.l.b16 %v19
  %v280 = vunpack.c.h.b16 %v19
  %v281 = vunpack.c.l.b16 %v20
  %v282 = vunpack.c.h.b16 %v20
  %v283 = vunpack.c.l.b16 %v21
  %v284 = vunpack.c.l.b16 %v22
  %v285 = vunpack.c.h.b16 %v22
  %v286 = vunpack.c.l.b16 %v23
  %v287 = vunpack.c.h.b16 %v23
  %v288 = vunpack.c.l.b16 %v24
  %v289 = vunpack.c.h.b16 %v24
  %v290 = vunpack.c.l.b16 %v25
  %v291 = vunpack.c.h.b16 %v25
  %v292 = vunpack.c.l.b16 %v26
  %v293 = vunpack.c.h.b16 %v26
  %v294 = vunpack.c.l.b16 %v27
  %v295 = vunpack.c.h.b16 %v27
  %v296 = vunpack.c.l.b16 %v28
  %v297 = vunpack.c.l.b16 %v29
  %v298 = vunpack.c.h.b16 %v29
  %v299 = vunpack.c.l.b16 %v30
  %v300 = vunpack.c.h.b16 %v30
  %v301 = vunpack.c.l.b16 %v31
  %v302 = vunpack.c.h.b16 %v31
  %v303 = vunpack.c.l.b16 %v32
  %v304 = vunpack.c.h.b16 %v32
  %v305 = vunpack.c.l.b16 %v33
  %v306 = vunpack.c.h.b16 %v33
  %v307 = vunpack.c.l.b16 %v34
  %v308 = vunpack.c.h.b16 %v34
  %v309 = vunpack.c.l.b16 %v35
  %v310 = vunpack.c.l.b16 %v36
  %v311 = vunpack.c.h.b16 %v36
  %v312 = vunpack.c.l.b16 %v37
  %v313 = vunpack.c.h.b16 %v37
  %v314 = vunpack.c.l.b16 %v38
  %v315 = vunpack.c.h.b16 %v38
  %v316 = vunpack.c.l.b16 %v39
  %v317 = vunpack.c.h.b16 %v39
  %v318 = vunpack.c.l.b16 %v40
  %v319 = vunpack.c.h.b16 %v40
  %v320 = vunpack.c.l.b16 %v41
  %v321 = vunpack.c.h.b16 %v41
  %v322 = vunpack.c.l.b16 %v42
  %v323 = vpack.c.b16 %v284, %v271
  %v324 = vpack.c.b16 %v285, %v272
  %v325 = vpack.c.b16 %v286, %v273
  %v326 = vpack.c.b16 %v287, %v274
  %v327 = vpack.c.b16 %v288, %v275
  %v328 = vpack.c.b16 %v289, %v276
  %v329 = vpack.c.b16 %v290, %v277
  %v330 = vpack.c.b16 %v291, %v278
  %v331 = vpack.c.b16 %v292, %v279
  %v332 = vpack.c.b16 %v293, %v280
  %v333 = vpack.c.b16 %v294, %v281
  %v334 = vpack.c.b16 %v295, %v282
  %v335 = vpack.c.b16 %v296, %v283
  %v336 = vpack.c.b16 %v310, %v297
  %v337 = vpack.c.b16 %v311, %v298
  %v338 = vpack.c.b16 %v312, %v299
  %v339 = vpack.c.b16 %v313, %v300
  %v340 = vpack.c.b16 %v314, %v301
  %v341 = vpack.c.b16 %v315, %v302
  %v342 = vpack.c.b16 %v316, %v303
  %v343 = vpack.c.b16 %v317, %v304
  %v344 = vpack.c.b16 %v318, %v305
  %v345 = vpack.c.b16 %v319, %v306
  %v346 = vpack.c.b16 %v320, %v307
  %v347 = vpack.c.b16 %v321, %v308
  %v348 = vpack.c.b16 %v322, %v309
  %v573 = vunpack.c.l.b16 %v43
  %v574 = vunpack.c.l.b16 %v44
  %v575 = vunpack.c.l.b16 %v45
  %v576 = vunpack.c.l.b16 %v46
  %v577 = vunpack.c.l.b16 %v47
  %v578 = vunpack.c.l.b16 %v48
  %v579 = vunpack.c.l.b16 %v49
  %v580 = vunpack.c.l.b16 %v50
  %v581 = vunpack.c.l.b16 %v51
  %v582 = vunpack.c.l.b16 %v52
  %v583 = vunpack.c.l.b16 %v53
  %v584 = vunpack.c.l.b16 %v54
  %v585 = vunpack.c.l.b16 %v55
  %v586 = vunpack.c.l.b16 %v56
  %v587 = vunpack.c.l.b16 %v57
  %v588 = vunpack.c.l.b16 %v58
  %v589 = vunpack.c.l.b16 %v59
  %v590 = vunpack.c.l.b16 %v60
  %v591 = vunpack.c.l.b16 %v61
  %v592 = vunpack.c.l.b16 %v62
  %v593 = vunpack.c.l.b16 %v63
  %v594 = vunpack.c.l.b16 %v64
  %v595 = vunpack.c.l.b16 %v65
  %v596 = vunpack.c.l.b16 %v66
  %v597 = vunpack.c.l.b16 %v67
  %v598 = vunpack.c.l.b16 %v68
  %v599 = vunpack.c.l.b16 %v69
  %v600 = vunpack.c.l.b16 %v70
  %v601 = vunpack.c.l.b16 %v71
  %v602 = vunpack.c.l.b16 %v72
  %v603 = vunpack.c.l.b16 %v73
  %v604 = vunpack.c.l.b16 %v74
  %v605 = vunpack.c.l.b16 %v75
  %v606 = vunpack.c.l.b16 %v76
  %v607 = vunpack.c.l.b16 %v77
  %v608 = vunpack.c.l.b16 %v78
  %v609 = vunpack.c.l.b16 %v79
  %v610 = vunpack.c.l.b16 %v80
  %v611 = vunpack.c.l.b16 %v81
  %v612 = vunpack.c.l.b16 %v82
  %v613 = vunpack.c.l.b16 %v83
  %v614 = vunpack.c.l.b16 %v84
  %v615 = vunpack.c.l.b16 %v85
  %v616 = vunpack.c.l.b16 %v86
  %v617 = vunpack.c.l.b16 %v87
  %v618 = vunpack.c.l.b16 %v88
  %v619 = vunpack.c.l.b16 %v89
  %v620 = vunpack.c.l.b16 %v90
  %v621 = vunpack.c.l.b16 %v91
  %v622 = vunpack.c.l.b16 %v92
  %v623 = vunpack.c.l.b16 %v93
  %v624 = vunpack.c.l.b16 %v94
  %v625 = vunpack.c.l.b16 %v95
  %v626 = vunpack.c.l.b16 %v96
  %v627 = vunpack.c.l.b16 %v97
  %v628 = vunpack.c.l.b16 %v98
  %v629 = vunpack.c.l.b16 %v99
  %v630 = vunpack.c.l.b16 %v100
  %v631 = vunpack.c.l.b16 %v101
  %v632 = vunpack.c.l.b16 %v102
  %v633 = vunpack.c.l.b16 %v103
  %v634 = vunpack.c.l.b16 %v104
  %v635 = vunpack.c.l.b16 %v105
  %v636 = vunpack.c.l.b16 %v106
  %v637 = vunpack.c.l.b16 %v107
  %v638 = vunpack.c.l.b16 %v108
  %v639 = vunpack.c.l.b16 %v109
  %v640 = vunpack.c.l.b16 %v110
  %v641 = vunpack.c.l.b16 %v111
  %v642 = vunpack.c.l.b16 %v112
  %v643 = vunpack.c.l.b16 %v113
  %v644 = vunpack.c.l.b16 %v114
  %v645 = vunpack.c.l.b16 %v115
  %v646 = vunpack.c.l.b16 %v116
  %v647 = vunpack.c.l.b16 %v117
  %v648 = vunpack.c.l.b16 %v118
  %v649 = vunpack.c.l.b16 %v119
  %v650 = vunpack.c.l.b16 %v120
  %v651 = vunpack.c.l.b16 %v121
  %v652 = vunpack.c.l.b16 %v122
  %v653 = vunpack.c.l.b16 %v123
  %v654 = vunpack.c.l.b16 %v124
  %v655 = vunpack.c.l.b16 %v125
  %v656 = vunpack.c.l.b16 %v126
  %v657 = vunpack.c.l.b16 %v127
  %v658 = vunpack.c.l.b16 %v128
  %v659 = vunpack.c.l.b16 %v129
  %v660 = vunpack.c.l.b16 %v130
  %v661 = vunpack.c.l.b16 %v131
  %v662 = vunpack.c.l.b16 %v132
  %v663 = vunpack.c.l.b16 %v133
  %v664 = vunpack.c.l.b16 %v134
  %v665 = vunpack.c.l.b16 %v135
  %v666 = vunpack.c.l.b16 %v136
  %v667 = vunpack.c.l.b16 %v137
  %v668 = vunpack.c.l.b16 %v138
  %v669 = vunpack.c.l.b16 %v139
  %v670 = vunpack.c.l.b16 %v140
  %v671 = vunpack.c.l.b16 %v141
  %v672 = vunpack.c.l.b16 %v142
  %v673 = vunpack.c.l.b16 %v143
  %v674 = vunpack.c.l.b16 %v144
  %v675 = vunpack.c.l.b16 %v145
  %v676 = vunpack.c.l.b16 %v146
  %v677 = vunpack.c.l.b16 %v147
  %v678 = vunpack.c.l.b16 %v148
  %v679 = vunpack.c.l.b16 %v149
  %v680 = vunpack.c.l.b16 %v150
  %v681 = vunpack.c.l.b16 %v151
  %v682 = vunpack.c.l.b16 %v152
  %v683 = vunpack.c.l.b16 %v153
  %v684 = vunpack.c.l.b16 %v154
  %v685 = vunpack.c.l.b16 %v155
  %v686 = vunpack.c.l.b16 %v156
  %v687 = vunpack.c.l.b16 %v157
  %v688 = vunpack.c.l.b16 %v158
  %v689 = vunpack.c.l.b16 %v159
  %v690 = vunpack.c.l.b16 %v160
  %v691 = vunpack.c.l.b16 %v161
  %v692 = vunpack.c.l.b16 %v162
  %v693 = vunpack.c.l.b16 %v163
  %v694 = vunpack.c.l.b16 %v164
  %v695 = vunpack.c.l.b16 %v165
  %v696 = vunpack.c.l.b16 %v166
  %v697 = vunpack.c.l.b16 %v167
  %v698 = vunpack.c.l.b16 %v168
  %v699 = vunpack.c.l.b16 %v169
  %v700 = vunpack.c.l.b16 %v170
  %v701 = vunpack.c.l.b16 %v171
  %v702 = vunpack.c.l.b16 %v172
  %v703 = vunpack.c.l.b16 %v173
  %v704 = vunpack.c.l.b16 %v174
  %v705 = vunpack.c.l.b16 %v175
  %v706 = vunpack.c.l.b16 %v176
  %v707 = vunpack.c.l.b16 %v177
  %v708 = vunpack.c.l.b16 %v178
  %v709 = vunpack.c.l.b16 %v179
  %v710 = vunpack.c.l.b16 %v180
  %v711 = vunpack.c.l.b16 %v181
  %v712 = vunpack.c.l.b16 %v182
  %v713 = vunpack.c.l.b16 %v183
  %v714 = vunpack.c.l.b16 %v184
  %v715 = vunpack.c.l.b16 %v185
  %v716 = vunpack.c.l.b16 %v186
  %v717 = vunpack.c.l.b16 %v187
  %v718 = vunpack.c.l.b16 %v188
  %v719 = vunpack.c.l.b16 %v189
  %v720 = vunpack.c.l.b16 %v190
  %v721 = vunpack.c.l.b16 %v191
  %v722 = vunpack.c.l.b16 %v192
  %v723 = vunpack.c.l.b16 %v193
  %v724 = vunpack.c.l.b16 %v194
  %v725 = vunpack.c.l.b16 %v195
  %v726 = vunpack.c.l.b16 %v196
  %v727 = vunpack.c.l.b16 %v197
  %v728 = vunpack.c.l.b16 %v198
  %v729 = vunpack.c.l.b16 %v199
  %v730 = vunpack.c.l.b16 %v200
  %v731 = vunpack.c.l.b16 %v201
  %v732 = vunpack.c.l.b16 %v202
  %v733 = vunpack.c.l.b16 %v203
  %v734 = vunpack.c.l.b16 %v204
  %v735 = vunpack.c.l.b16 %v205
  %v736 = vunpack.c.l.b16 %v206
  %v737 = vunpack.c.l.b16 %v207
  %v738 = vunpack.c.l.b16 %v208
  %v739 = vunpack.c.l.b16 %v209
  %v740 = vunpack.c.l.b16 %v210
  %v741 = vunpack.c.l.b16 %v211
  %v742 = vunpack.c.l.b16 %v212
  %v743 = vunpack.c.l.b16 %v213
  %v744 = vunpack.c.l.b16 %v214
  %v745 = vunpack.c.l.b16 %v215
  %v746 = vunpack.c.l.b16 %v216
  %v747 = vunpack.c.l.b16 %v217
  %v748 = vunpack.c.l.b16 %v218
  %v749 = vunpack.c.l.b16 %v219
  %v750 = vunpack.c.l.b16 %v220
  %v751 = vunpack.c.l.b16 %v221
  %v752 = vunpack.c.l.b16 %v222
  %v753 = vunpack.c.l.b16 %v223
  %v754 = vunpack.c.l.b16 %v224
  %v755 = vunpack.c.l.b16 %v225
  %v756 = vunpack.c.l.b16 %v226
  %v757 = vunpack.c.l.b16 %v227
  %v758 = vunpack.c.l.b16 %v228
  %v759 = vunpack.c.l.b16 %v229
  %v760 = vunpack.c.l.b16 %v230
  %v761 = vunpack.c.l.b16 %v231
  %v762 = vunpack.c.l.b16 %v232
  %v763 = vunpack.c.l.b16 %v233
  %v764 = vunpack.c.l.b16 %v234
  %v765 = vunpack.c.l.b16 %v235
  %v766 = vunpack.c.l.b16 %v236
  %v767 = vunpack.c.l.b16 %v237
  %v768 = vunpack.c.l.b16 %v238
  %v769 = vunpack.c.l.b16 %v239
  %v770 = vunpack.c.l.b16 %v240
  %v771 = vunpack.c.l.b16 %v241
  %v772 = vunpack.c.l.b16 %v242
  %v773 = vpack.c.b16 %v574, %v573
  %v774 = vpack.c.b16 %v576, %v575
  %v775 = vpack.c.b16 %v578, %v577
  %v776 = vpack.c.b16 %v580, %v579
  %v777 = vpack.c.b16 %v582, %v581
  %v778 = vpack.c.b16 %v584, %v583
  %v779 = vpack.c.b16 %v586, %v585
  %v780 = vpack.c.b16 %v588, %v587
  %v781 = vpack.c.b16 %v590, %v589
  %v782 = vpack.c.b16 %v592, %v591
  %v783 = vpack.c.b16 %v594, %v593
  %v784 = vpack.c.b16 %v596, %v595
  %v785 = vpack.c.b16 %v598, %v597
  %v786 = vpack.c.b16 %v600, %v599
  %v787 = vpack.c.b16 %v602, %v601
  %v788 = vpack.c.b16 %v604, %v603
  %v789 = vpack.c.b16 %v606, %v605
  %v790 = vpack.c.b16 %v608, %v607
  %v791 = vpack.c.b16 %v610, %v609
  %v792 = vpack.c.b16 %v612, %v611
  %v793 = vpack.c.b16 %v614, %v613
  %v794 = vpack.c.b16 %v616, %v615
  %v795 = vpack.c.b16 %v618, %v617
  %v796 = vpack.c.b16 %v620, %v619
  %v797 = vpack.c.b16 %v622, %v621
  %v798 = vpack.c.b16 %v624, %v623
  %v799 = vpack.c.b16 %v626, %v625
  %v800 = vpack.c.b16 %v628, %v627
  %v801 = vpack.c.b16 %v630, %v629
  %v802 = vpack.c.b16 %v632, %v631
  %v803 = vpack.c.b16 %v634, %v633
  %v804 = vpack.c.b16 %v636, %v635
  %v805 = vpack.c.b16 %v638, %v637
  %v806 = vpack.c.b16 %v640, %v639
  %v807 = vpack.c.b16 %v642, %v641
  %v808 = vpack.c.b16 %v644, %v643
  %v809 = vpack.c.b16 %v646, %v645
  %v810 = vpack.c.b16 %v648, %v647
  %v811 = vpack.c.b16 %v650, %v649
  %v812 = vpack.c.b16 %v652, %v651
  %v813 = vpack.c.b16 %v654, %v653
  %v814 = vpack.c.b16 %v656, %v655
  %v815 = vpack.c.b16 %v658, %v657
  %v816 = vpack.c.b16 %v660, %v659
  %v817 = vpack.c.b16 %v662, %v661
  %v818 = vpack.c.b16 %v664, %v663
  %v819 = vpack.c.b16 %v666, %v665
  %v820 = vpack.c.b16 %v668, %v667
  %v821 = vpack.c.b16 %v670, %v669
  %v822 = vpack.c.b16 %v672, %v671
  %v823 = vpack.c.b16 %v674, %v673
  %v824 = vpack.c.b16 %v676, %v675
  %v825 = vpack.c.b16 %v678, %v677
  %v826 = vpack.c.b16 %v680, %v679
  %v827 = vpack.c.b16 %v682, %v681
  %v828 = vpack.c.b16 %v684, %v683
  %v829 = vpack.c.b16 %v686, %v685
  %v830 = vpack.c.b16 %v688, %v687
  %v831 = vpack.c.b16 %v690, %v689
  %v832 = vpack.c.b16 %v692, %v691
  %v833 = vpack.c.b16 %v694, %v693
  %v834 = vpack.c.b16 %v696, %v695
  %v835 = vpack.c.b16 %v698, %v697
  %v836 = vpack.c.b16 %v700, %v699
  %v837 = vpack.c.b16 %v702, %v701
  %v838 = vpack.c.b16 %v704, %v703
  %v839 = vpack.c.b16 %v706, %v705
  %v840 = vpack.c.b16 %v708, %v707
  %v841 = vpack.c.b16 %v710, %v709
  %v842 = vpack.c.b16 %v712, %v711
  %v843 = vpack.c.b16 %v714, %v713
  %v844 = vpack.c.b16 %v716, %v715
  %v845 = vpack.c.b16 %v718, %v717
  %v846 = vpack.c.b16 %v720, %v719
  %v847 = vpack.c.b16 %v722, %v721
  %v848 = vpack.c.b16 %v724, %v723
  %v849 = vpack.c.b16 %v726, %v725
  %v850 = vpack.c.b16 %v728, %v727
  %v851 = vpack.c.b16 %v730, %v729
  %v852 = vpack.c.b16 %v732, %v731
  %v853 = vpack.c.b16 %v734, %v733
  %v854 = vpack.c.b16 %v736, %v735
  %v855 = vpack.c.b16 %v738, %v737
  %v856 = vpack.c.b16 %v740, %v739
  %v857 = vpack.c.b16 %v742, %v741
  %v858 = vpack.c.b16 %v744, %v743
  %v859 = vpack.c.b16 %v746, %v745
  %v860 = vpack.c.b16 %v748, %v747
  %v861 = vpack.c.b16 %v750, %v749
  %v862 = vpack.c.b16 %v752, %v751
  %v863 = vpack.c.b16 %v754, %v753
  %v864 = vpack.c.b16 %v756, %v755
  %v865 = vpack.c.b16 %v758, %v757
  %v866 = vpack.c.b16 %v760, %v759
  %v867 = vpack.c.b16 %v762, %v761
  %v868 = vpack.c.b16 %v764, %v763
  %v869 = vpack.c.b16 %v766, %v765
  %v870 = vpack.c.b16 %v768, %v767
  %v871 = vpack.c.b16 %v770, %v769
  %v872 = vpack.c.b16 %v772, %v771
  %vm973 = vcmask 523264
  %v975 = vsel %vm973, %v335, 0
  %v978 = vsel %vm973, %v348, 0
  %980 = vmatpush.bf16.msra.mxu0 %v780
  %981 = vmatpush.bf16.msra.mxu0 %v779
  %982 = vmatpush.bf16.msra.mxu0 %v778
  %983 = vmatpush.bf16.msra.mxu0 %v777
  %984 = vmatpush.bf16.msra.mxu0 %v776
  %985 = vmatpush.bf16.msra.mxu0 %v775
  %986 = vmatpush.bf16.msra.mxu0 %v774
  %987 = vmatpush.bf16.msra.mxu0 %v773
  %988 = vmatmul.bf16.gmra.mxu0 %v323
  %v989 = vpop.f32.mrf.mxu0
  %v990 = vadd.f32 0.0, %v989
  %v991 = vpop.f32.mrf.mxu0
  %v992 = vadd.f32 0.0, %v991
  %993 = vmatmul.bf16.gmra.mxu0 %v336
  %v994 = vpop.f32.mrf.mxu0
  %v995 = vadd.f32 0.0, %v994
  %v996 = vpop.f32.mrf.mxu0
  %v997 = vadd.f32 0.0, %v996
  %998 = vdwg.mxu0
  %999 = vmatpush.bf16.msra.mxu0 %v788
  %1000 = vmatpush.bf16.msra.mxu0 %v787
  %1001 = vmatpush.bf16.msra.mxu0 %v786
  %1002 = vmatpush.bf16.msra.mxu0 %v785
  %1003 = vmatpush.bf16.msra.mxu0 %v784
  %1004 = vmatpush.bf16.msra.mxu0 %v783
  %1005 = vmatpush.bf16.msra.mxu0 %v782
  %1006 = vmatpush.bf16.msra.mxu0 %v781
  %1007 = vmatmul.bf16.gmra.mxu0 %v324
  %v1008 = vpop.f32.mrf.mxu0
  %v1009 = vadd.f32 %v990, %v1008
  %v1010 = vpop.f32.mrf.mxu0
  %v1011 = vadd.f32 %v992, %v1010
  %1012 = vmatmul.bf16.gmra.mxu0 %v337
  %v1013 = vpop.f32.mrf.mxu0
  %v1014 = vadd.f32 %v995, %v1013
  %v1015 = vpop.f32.mrf.mxu0
  %v1016 = vadd.f32 %v997, %v1015
  %1017 = vdwg.mxu0
  %1018 = vmatpush.bf16.msra.mxu0 %v796
  %1019 = vmatpush.bf16.msra.mxu0 %v795
  %1020 = vmatpush.bf16.msra.mxu0 %v794
  %1021 = vmatpush.bf16.msra.mxu0 %v793
  %1022 = vmatpush.bf16.msra.mxu0 %v792
  %1023 = vmatpush.bf16.msra.mxu0 %v791
  %1024 = vmatpush.bf16.msra.mxu0 %v790
  %1025 = vmatpush.bf16.msra.mxu0 %v789
  %1026 = vmatmul.bf16.gmra.mxu0 %v325
  %v1027 = vpop.f32.mrf.mxu0
  %v1028 = vadd.f32 %v1009, %v1027
  %v1029 = vpop.f32.mrf.mxu0
  %v1030 = vadd.f32 %v1011, %v1029
  %1031 = vmatmul.bf16.gmra.mxu0 %v338
  %v1032 = vpop.f32.mrf.mxu0
  %v1033 = vadd.f32 %v1014, %v1032
  %v1034 = vpop.f32.mrf.mxu0
  %v1035 = vadd.f32 %v1016, %v1034
  %1036 = vdwg.mxu0
  %1037 = vmatpush.bf16.msra.mxu0 %v804
  %1038 = vmatpush.bf16.msra.mxu0 %v803
  %1039 = vmatpush.bf16.msra.mxu0 %v802
  %1040 = vmatpush.bf16.msra.mxu0 %v801
  %1041 = vmatpush.bf16.msra.mxu0 %v800
  %1042 = vmatpush.bf16.msra.mxu0 %v799
  %1043 = vmatpush.bf16.msra.mxu0 %v798
  %1044 = vmatpush.bf16.msra.mxu0 %v797
  %1045 = vmatmul.bf16.gmra.mxu0 %v326
  %v1046 = vpop.f32.mrf.mxu0
  %v1047 = vadd.f32 %v1028, %v1046
  %v1048 = vpop.f32.mrf.mxu0
  %v1049 = vadd.f32 %v1030, %v1048
  %1050 = vmatmul.bf16.gmra.mxu0 %v339
  %v1051 = vpop.f32.mrf.mxu0
  %v1052 = vadd.f32 %v1033, %v1051
  %v1053 = vpop.f32.mrf.mxu0
  %v1054 = vadd.f32 %v1035, %v1053
  %1055 = vdwg.mxu0
  %1056 = vmatpush.bf16.msra.mxu0 %v812
  %1057 = vmatpush.bf16.msra.mxu0 %v811
  %1058 = vmatpush.bf16.msra.mxu0 %v810
  %1059 = vmatpush.bf16.msra.mxu0 %v809
  %1060 = vmatpush.bf16.msra.mxu0 %v808
  %1061 = vmatpush.bf16.msra.mxu0 %v807
  %1062 = vmatpush.bf16.msra.mxu0 %v806
  %1063 = vmatpush.bf16.msra.mxu0 %v805
  %1064 = vmatmul.bf16.gmra.mxu0 %v327
  %v1065 = vpop.f32.mrf.mxu0
  %v1066 = vadd.f32 %v1047, %v1065
  %v1067 = vpop.f32.mrf.mxu0
  %v1068 = vadd.f32 %v1049, %v1067
  %1069 = vmatmul.bf16.gmra.mxu0 %v340
  %v1070 = vpop.f32.mrf.mxu0
  %v1071 = vadd.f32 %v1052, %v1070
  %v1072 = vpop.f32.mrf.mxu0
  %v1073 = vadd.f32 %v1054, %v1072
  %1074 = vdwg.mxu0
  %1075 = vmatpush.bf16.msra.mxu0 %v820
  %1076 = vmatpush.bf16.msra.mxu0 %v819
  %1077 = vmatpush.bf16.msra.mxu0 %v818
  %1078 = vmatpush.bf16.msra.mxu0 %v817
  %1079 = vmatpush.bf16.msra.mxu0 %v816
  %1080 = vmatpush.bf16.msra.mxu0 %v815
  %1081 = vmatpush.bf16.msra.mxu0 %v814
  %1082 = vmatpush.bf16.msra.mxu0 %v813
  %1083 = vmatmul.bf16.gmra.mxu0 %v328
  %v1084 = vpop.f32.mrf.mxu0
  %v1085 = vadd.f32 %v1066, %v1084
  %v1086 = vpop.f32.mrf.mxu0
  %v1087 = vadd.f32 %v1068, %v1086
  %1088 = vmatmul.bf16.gmra.mxu0 %v341
  %v1089 = vpop.f32.mrf.mxu0
  %v1090 = vadd.f32 %v1071, %v1089
  %v1091 = vpop.f32.mrf.mxu0
  %v1092 = vadd.f32 %v1073, %v1091
  %1093 = vdwg.mxu0
  %1094 = vmatpush.bf16.msra.mxu0 %v828
  %1095 = vmatpush.bf16.msra.mxu0 %v827
  %1096 = vmatpush.bf16.msra.mxu0 %v826
  %1097 = vmatpush.bf16.msra.mxu0 %v825
  %1098 = vmatpush.bf16.msra.mxu0 %v824
  %1099 = vmatpush.bf16.msra.mxu0 %v823
  %1100 = vmatpush.bf16.msra.mxu0 %v822
  %1101 = vmatpush.bf16.msra.mxu0 %v821
  %1102 = vmatmul.bf16.gmra.mxu0 %v329
  %v1103 = vpop.f32.mrf.mxu0
  %v1104 = vadd.f32 %v1085, %v1103
  %v1105 = vpop.f32.mrf.mxu0
  %v1106 = vadd.f32 %v1087, %v1105
  %1107 = vmatmul.bf16.gmra.mxu0 %v342
  %v1108 = vpop.f32.mrf.mxu0
  %v1109 = vadd.f32 %v1090, %v1108
  %v1110 = vpop.f32.mrf.mxu0
  %v1111 = vadd.f32 %v1092, %v1110
  %1112 = vdwg.mxu0
  %1113 = vmatpush.bf16.msra.mxu0 %v836
  %1114 = vmatpush.bf16.msra.mxu0 %v835
  %1115 = vmatpush.bf16.msra.mxu0 %v834
  %1116 = vmatpush.bf16.msra.mxu0 %v833
  %1117 = vmatpush.bf16.msra.mxu0 %v832
  %1118 = vmatpush.bf16.msra.mxu0 %v831
  %1119 = vmatpush.bf16.msra.mxu0 %v830
  %1120 = vmatpush.bf16.msra.mxu0 %v829
  %1121 = vmatmul.bf16.gmra.mxu0 %v330
  %v1122 = vpop.f32.mrf.mxu0
  %v1123 = vadd.f32 %v1104, %v1122
  %v1124 = vpop.f32.mrf.mxu0
  %v1125 = vadd.f32 %v1106, %v1124
  %1126 = vmatmul.bf16.gmra.mxu0 %v343
  %v1127 = vpop.f32.mrf.mxu0
  %v1128 = vadd.f32 %v1109, %v1127
  %v1129 = vpop.f32.mrf.mxu0
  %v1130 = vadd.f32 %v1111, %v1129
  %1131 = vdwg.mxu0
  %1132 = vmatpush.bf16.msra.mxu0 %v844
  %1133 = vmatpush.bf16.msra.mxu0 %v843
  %1134 = vmatpush.bf16.msra.mxu0 %v842
  %1135 = vmatpush.bf16.msra.mxu0 %v841
  %1136 = vmatpush.bf16.msra.mxu0 %v840
  %1137 = vmatpush.bf16.msra.mxu0 %v839
  %1138 = vmatpush.bf16.msra.mxu0 %v838
  %1139 = vmatpush.bf16.msra.mxu0 %v837
  %1140 = vmatmul.bf16.gmra.mxu0 %v331
  %v1141 = vpop.f32.mrf.mxu0
  %v1142 = vadd.f32 %v1123, %v1141
  %v1143 = vpop.f32.mrf.mxu0
  %v1144 = vadd.f32 %v1125, %v1143
  %1145 = vmatmul.bf16.gmra.mxu0 %v344
  %v1146 = vpop.f32.mrf.mxu0
  %v1147 = vadd.f32 %v1128, %v1146
  %v1148 = vpop.f32.mrf.mxu0
  %v1149 = vadd.f32 %v1130, %v1148
  %1150 = vdwg.mxu0
  %1151 = vmatpush.bf16.msra.mxu0 %v852
  %1152 = vmatpush.bf16.msra.mxu0 %v851
  %1153 = vmatpush.bf16.msra.mxu0 %v850
  %1154 = vmatpush.bf16.msra.mxu0 %v849
  %1155 = vmatpush.bf16.msra.mxu0 %v848
  %1156 = vmatpush.bf16.msra.mxu0 %v847
  %1157 = vmatpush.bf16.msra.mxu0 %v846
  %1158 = vmatpush.bf16.msra.mxu0 %v845
  %1159 = vmatmul.bf16.gmra.mxu0 %v332
  %v1160 = vpop.f32.mrf.mxu0
  %v1161 = vadd.f32 %v1142, %v1160
  %v1162 = vpop.f32.mrf.mxu0
  %v1163 = vadd.f32 %v1144, %v1162
  %1164 = vmatmul.bf16.gmra.mxu0 %v345
  %v1165 = vpop.f32.mrf.mxu0
  %v1166 = vadd.f32 %v1147, %v1165
  %v1167 = vpop.f32.mrf.mxu0
  %v1168 = vadd.f32 %v1149, %v1167
  %1169 = vdwg.mxu0
  %1170 = vmatpush.bf16.msra.mxu0 %v860
  %1171 = vmatpush.bf16.msra.mxu0 %v859
  %1172 = vmatpush.bf16.msra.mxu0 %v858
  %1173 = vmatpush.bf16.msra.mxu0 %v857
  %1174 = vmatpush.bf16.msra.mxu0 %v856
  %1175 = vmatpush.bf16.msra.mxu0 %v855
  %1176 = vmatpush.bf16.msra.mxu0 %v854
  %1177 = vmatpush.bf16.msra.mxu0 %v853
  %1178 = vmatmul.bf16.gmra.mxu0 %v333
  %v1179 = vpop.f32.mrf.mxu0
  %v1180 = vadd.f32 %v1161, %v1179
  %v1181 = vpop.f32.mrf.mxu0
  %v1182 = vadd.f32 %v1163, %v1181
  %1183 = vmatmul.bf16.gmra.mxu0 %v346
  %v1184 = vpop.f32.mrf.mxu0
  %v1185 = vadd.f32 %v1166, %v1184
  %v1186 = vpop.f32.mrf.mxu0
  %v1187 = vadd.f32 %v1168, %v1186
  %1188 = vdwg.mxu0
  %1189 = vmatpush.bf16.msra.mxu0 %v868
  %1190 = vmatpush.bf16.msra.mxu0 %v867
  %1191 = vmatpush.bf16.msra.mxu0 %v866
  %1192 = vmatpush.bf16.msra.mxu0 %v865
  %1193 = vmatpush.bf16.msra.mxu0 %v864
  %1194 = vmatpush.bf16.msra.mxu0 %v863
  %1195 = vmatpush.bf16.msra.mxu0 %v862
  %1196 = vmatpush.bf16.msra.mxu0 %v861
  %1197 = vmatmul.bf16.gmra.mxu0 %v334
  %v1198 = vpop.f32.mrf.mxu0
  %v1199 = vadd.f32 %v1180, %v1198
  %v1200 = vpop.f32.mrf.mxu0
  %v1201 = vadd.f32 %v1182, %v1200
  %1202 = vmatmul.bf16.gmra.mxu0 %v347
  %v1203 = vpop.f32.mrf.mxu0
  %v1204 = vadd.f32 %v1185, %v1203
  %v1205 = vpop.f32.mrf.mxu0
  %v1206 = vadd.f32 %v1187, %v1205
  %1207 = vdwg.mxu0
  %1208 = vmatpush.bf16.msra.mxu0 0
  %1209 = vmatpush.bf16.msra.mxu0 0
  %1210 = vmatpush.bf16.msra.mxu0 0
  %1211 = vmatpush.bf16.msra.mxu0 0
  %1212 = vmatpush.bf16.msra.mxu0 %v872
  %1213 = vmatpush.bf16.msra.mxu0 %v871
  %1214 = vmatpush.bf16.msra.mxu0 %v870
  %1215 = vmatpush.bf16.msra.mxu0 %v869
  %1216 = vmatmul.bf16.gmra.mxu0 %v975
  %v1217 = vpop.f32.mrf.mxu0
  %v1218 = vadd.f32 %v1199, %v1217
  %v1219 = vpop.f32.mrf.mxu0
  %v1220 = vadd.f32 %v1201, %v1219
  %1221 = vmatmul.bf16.gmra.mxu0 %v978
  %v1222 = vpop.f32.mrf.mxu0
  %v1223 = vadd.f32 %v1204, %v1222
  %v1224 = vpop.f32.mrf.mxu0
  %v1225 = vadd.f32 %v1206, %v1224
  %1226 = vdwg.mxu0
  %v1227 = vmax.f32 %v1218, %v1220
  %v1228 = vmax.f32 %v1223, %v1225
  %v1229 = vmax.f32 %v1227, %v1228
  %v1230 = vld [vmem:[%s2] sm:$0x1]
  %v1232 = vperm.slane %v1230, 0
  %v1234 = vadd.f32 %v1229, %v1232
  %v1235 = vmax.f32 %v1234, 0.0
  %1236 = vst [vmem:[%s3] sm:$0xff] %v1235
  // Predicated region
  $region14: #{cnn_forward.3} parent=0 // pred_check
    _
  $region15: #{cnn_forward.3} parent=0 // pred_check_branch
    %1238 = sbr.rel (0) target = $region17
  $region16: #{cnn_forward.3} parent=0 // pred_region
    _
  $region17: #{cnn_forward.3} parent=0 // pred_fallthru
    _
  // Predicated region
  $region18: #{cnn_forward.3} parent=0 // pred_check
    _
  $region19: #{cnn_forward.3} parent=0 // pred_check_branch
    %1240 = sbr.rel (0) target = $region21
  $region20: #{cnn_forward.3} parent=0 // pred_region
    _
  $region21: #{cnn_forward.3} parent=0 // pred_fallthru
    _

</llo_original>
